<compile_context>
chip_gen: v5e
topology: v5e:2x2
jax: 0.10.0
libtpu: 0.0.40
codegen_flags: <defaults>
</compile_context>

<pallas_src>
import functools

import jax
import jax.numpy as jnp
from jax import lax
from jax.experimental import pallas as pl
from jax.experimental.pallas import tpu as pltpu


# ----------------------------------------------------------------------------
# Fused depthwise "7x7 + 5x5 + 3x3 + identity" conv kernel, grid = (B, C/tc)
# ----------------------------------------------------------------------------
def _ppeg_conv_kernel(x_ref, w_ref, b_ref, o_ref, *, H, W):
    # x_ref : (1, H+6, W+6, tc)  zero-padded NHWC feature tile
    # w_ref : (49, tc)           effective 7x7 per-channel weights (row-major taps)
    # b_ref : (1, tc)            summed per-channel bias
    xp = x_ref[0].astype(jnp.float32)            # (H+6, W+6, tc)
    wv = w_ref[...].astype(jnp.float32)          # (49, tc)
    tc = xp.shape[-1]

    acc = jnp.zeros((H, W, tc), jnp.float32)
    for dy in range(7):
        row = xp[dy:dy + H, :, :]                # (H, W+6, tc) -- hoisted row slice
        for dx in range(7):
            tap = row[:, dx:dx + W, :]           # (H, W, tc)
            wt = wv[dy * 7 + dx:dy * 7 + dx + 1, :]   # (1, tc), broadcasts over H, W
            acc = acc + tap * wt

    o_ref[0] = (acc + b_ref[...].astype(jnp.float32)).astype(o_ref.dtype)


# ----------------------------------------------------------------------------
# Forward pass
# ----------------------------------------------------------------------------
def ppeg_forward(x, params, *, H, W):
    """x: (B, 1 + H*W, C) tokens; params: depthwise conv weights/biases."""
    B, N, C = x.shape
    assert N == 1 + H * W

    cls_tok = x[:, :1, :]                                    # (B, 1, C)
    feat = x[:, 1:, :].reshape(B, H, W, C)                   # NHWC

    # --- fold conv7 + conv5 + conv3 + identity into one effective 7x7 kernel ---
    # PyTorch depthwise weights are (C, 1, k, k); we store them as (C, k, k).
    w_eff = jnp.transpose(params["w7"], (1, 2, 0))           # (7, 7, C)
    w_eff = w_eff.at[1:6, 1:6].add(jnp.transpose(params["w5"], (1, 2, 0)))
    w_eff = w_eff.at[2:5, 2:5].add(jnp.transpose(params["w3"], (1, 2, 0)))
    w_eff = w_eff.at[3, 3].add(1.0)                          # identity (cnn_feat) term
    w_eff = w_eff.reshape(49, C).astype(jnp.float32)
    b_eff = (params["b7"] + params["b5"] + params["b3"]).reshape(1, C).astype(jnp.float32)

    # zero "same" padding for the 7x7 support (done once in XLA; kernel reads it once)
    feat_pad = jnp.pad(feat, ((0, 0), (3, 3), (3, 3), (0, 0)))

    # channel tiling: 128-lane blocks when possible (lane-dense stores, pipelining)
    tc = 128 if (C % 128 == 0) else C
    grid = (B, C // tc)

    out = pl.pallas_call(
        functools.partial(_ppeg_conv_kernel, H=H, W=W),
        out_shape=jax.ShapeDtypeStruct((B, H, W, C), x.dtype),
        grid=grid,
        in_specs=[
            pl.BlockSpec((1, H + 6, W + 6, tc), lambda b, c: (b, 0, 0, c)),
            pl.BlockSpec((49, tc), lambda b, c: (0, c)),
            pl.BlockSpec((1, tc), lambda b, c: (0, c)),
        ],
        out_specs=pl.BlockSpec((1, H, W, tc), lambda b, c: (b, 0, 0, c)),
        compiler_params=pltpu.CompilerParams(
            dimension_semantics=("parallel", "parallel"),
            vmem_limit_bytes=32 * 1024 * 1024,
        ),
    )(feat_pad, w_eff, b_eff)

    out = out.reshape(B, H * W, C)
    return jnp.concatenate([cls_tok, out], axis=1)


# ----------------------------------------------------------------------------
# Pure-JAX reference (independent of the kernel) for a correctness check
# ----------------------------------------------------------------------------
def ppeg_reference(x, params, H, W):
    B, N, C = x.shape
    cls_tok = x[:, :1, :]
    feat = x[:, 1:, :].reshape(B, H, W, C)

    def dw_conv(f, w, b):
        rhs = jnp.transpose(w, (1, 2, 0))[:, :, None, :]     # HWIO (k, k, 1, C)
        out = lax.conv_general_dilated(
            f, rhs, window_strides=(1, 1), padding="SAME",
            dimension_numbers=("NHWC", "HWIO", "NHWC"),
            feature_group_count=C)
        return out + b

    y = (feat
         + dw_conv(feat, params["w7"], params["b7"])
         + dw_conv(feat, params["w5"], params["b5"])
         + dw_conv(feat, params["w3"], params["b3"]))
    y = y.reshape(B, H * W, C)
    return jnp.concatenate([cls_tok, y], axis=1)


if __name__ == "__main__":
    key = jax.random.PRNGKey(0)
    B, H, W, C = 2, 8, 8, 128          # small stand-in for dim=512 feature maps
    N = 1 + H * W

    k_x, k7, k5, k3, kb7, kb5, kb3 = jax.random.split(key, 7)
    x = jax.random.normal(k_x, (B, N, C), jnp.float32)
    params = dict(
        w7=0.1 * jax.random.normal(k7, (C, 7, 7), jnp.float32),
        b7=0.05 * jax.random.normal(kb7, (C,), jnp.float32),
        w5=0.1 * jax.random.normal(k5, (C, 5, 5), jnp.float32),
        b5=0.05 * jax.random.normal(kb5, (C,), jnp.float32),
        w3=0.1 * jax.random.normal(k3, (C, 3, 3), jnp.float32),
        b3=0.05 * jax.random.normal(kb3, (C,), jnp.float32),
    )

    fwd = jax.jit(functools.partial(ppeg_forward, H=H, W=W))
    y = fwd(x, params)
    jax.block_until_ready(y)
    assert y.shape == (B, N, C)
    assert bool(jnp.all(jnp.isfinite(y)))

    y_ref = ppeg_reference(x, params, H, W)
    max_err = float(jnp.max(jnp.abs(y - y_ref)))
    assert max_err < 1e-4, f"mismatch vs reference: {max_err}"

    print("KERNEL_OK")
</pallas_src>

<mosaic_0001>
module attributes {stable_mosaic.version = 11 : i64} {
  func.func @_ppeg_conv_kernel(%arg0: i32, %arg1: i32, %arg2: memref<1x14x14x128xf32, #tpu.memory_space<vmem>>, %arg3: memref<49x128xf32, #tpu.memory_space<vmem>>, %arg4: memref<1x128xf32, #tpu.memory_space<vmem>>, %arg5: memref<1x8x8x128xf32, #tpu.memory_space<vmem>>) attributes {dimension_semantics = [#tpu.dimension_semantics<parallel>, #tpu.dimension_semantics<parallel>], iteration_bounds = array<i64: 2, 1>, scalar_prefetch = 0 : i64, scratch_operands = 0 : i64, tpu.core_type = #tpu.core_type<tc>, window_params = [{transform_indices = @transform_0, window_bounds = array<i64: 1, 14, 14, 128>}, {transform_indices = @transform_1, window_bounds = array<i64: 49, 128>}, {transform_indices = @transform_2, window_bounds = array<i64: 1, 128>}, {transform_indices = @transform_3, window_bounds = array<i64: 1, 8, 8, 128>}]} {
    %c0 = arith.constant 0 : index
    %c0_0 = arith.constant 0 : index
    %c0_1 = arith.constant 0 : index
    %c0_2 = arith.constant 0 : index
    %0 = vector.load %arg2[%c0, %c0_0, %c0_1, %c0_2] : memref<1x14x14x128xf32, #tpu.memory_space<vmem>>, vector<1x14x14x128xf32>
    %1 = vector.shape_cast %0 : vector<1x14x14x128xf32> to vector<14x14x128xf32>
    %c0_3 = arith.constant 0 : index
    %c0_4 = arith.constant 0 : index
    %2 = vector.load %arg3[%c0_3, %c0_4] : memref<49x128xf32, #tpu.memory_space<vmem>>, vector<49x128xf32>
    %cst = arith.constant 0.000000e+00 : f32
    %3 = vector.broadcast %cst : f32 to vector<8x8x128xf32>
    %4 = vector.extract_strided_slice %1 {offsets = [0, 0, 0], sizes = [8, 14, 128], strides = [1, 1, 1]} : vector<14x14x128xf32> to vector<8x14x128xf32>
    %5 = vector.extract_strided_slice %4 {offsets = [0, 0, 0], sizes = [8, 8, 128], strides = [1, 1, 1]} : vector<8x14x128xf32> to vector<8x8x128xf32>
    %6 = vector.extract_strided_slice %2 {offsets = [0, 0], sizes = [1, 128], strides = [1, 1]} : vector<49x128xf32> to vector<1x128xf32>
    %7 = vector.shape_cast %6 : vector<1x128xf32> to vector<1x1x128xf32>
    %8 = vector.broadcast %7 : vector<1x1x128xf32> to vector<8x8x128xf32>
    %9 = arith.mulf %5, %8 : vector<8x8x128xf32>
    %10 = arith.addf %3, %9 : vector<8x8x128xf32>
    %11 = vector.extract_strided_slice %4 {offsets = [0, 1, 0], sizes = [8, 8, 128], strides = [1, 1, 1]} : vector<8x14x128xf32> to vector<8x8x128xf32>
    %12 = vector.extract_strided_slice %2 {offsets = [1, 0], sizes = [1, 128], strides = [1, 1]} : vector<49x128xf32> to vector<1x128xf32>
    %13 = vector.shape_cast %12 : vector<1x128xf32> to vector<1x1x128xf32>
    %14 = vector.broadcast %13 : vector<1x1x128xf32> to vector<8x8x128xf32>
    %15 = arith.mulf %11, %14 : vector<8x8x128xf32>
    %16 = arith.addf %10, %15 : vector<8x8x128xf32>
    %17 = vector.extract_strided_slice %4 {offsets = [0, 2, 0], sizes = [8, 8, 128], strides = [1, 1, 1]} : vector<8x14x128xf32> to vector<8x8x128xf32>
    %18 = vector.extract_strided_slice %2 {offsets = [2, 0], sizes = [1, 128], strides = [1, 1]} : vector<49x128xf32> to vector<1x128xf32>
    %19 = vector.shape_cast %18 : vector<1x128xf32> to vector<1x1x128xf32>
    %20 = vector.broadcast %19 : vector<1x1x128xf32> to vector<8x8x128xf32>
    %21 = arith.mulf %17, %20 : vector<8x8x128xf32>
    %22 = arith.addf %16, %21 : vector<8x8x128xf32>
    %23 = vector.extract_strided_slice %4 {offsets = [0, 3, 0], sizes = [8, 8, 128], strides = [1, 1, 1]} : vector<8x14x128xf32> to vector<8x8x128xf32>
    %24 = vector.extract_strided_slice %2 {offsets = [3, 0], sizes = [1, 128], strides = [1, 1]} : vector<49x128xf32> to vector<1x128xf32>
    %25 = vector.shape_cast %24 : vector<1x128xf32> to vector<1x1x128xf32>
    %26 = vector.broadcast %25 : vector<1x1x128xf32> to vector<8x8x128xf32>
    %27 = arith.mulf %23, %26 : vector<8x8x128xf32>
    %28 = arith.addf %22, %27 : vector<8x8x128xf32>
    %29 = vector.extract_strided_slice %4 {offsets = [0, 4, 0], sizes = [8, 8, 128], strides = [1, 1, 1]} : vector<8x14x128xf32> to vector<8x8x128xf32>
    %30 = vector.extract_strided_slice %2 {offsets = [4, 0], sizes = [1, 128], strides = [1, 1]} : vector<49x128xf32> to vector<1x128xf32>
    %31 = vector.shape_cast %30 : vector<1x128xf32> to vector<1x1x128xf32>
    %32 = vector.broadcast %31 : vector<1x1x128xf32> to vector<8x8x128xf32>
    %33 = arith.mulf %29, %32 : vector<8x8x128xf32>
    %34 = arith.addf %28, %33 : vector<8x8x128xf32>
    %35 = vector.extract_strided_slice %4 {offsets = [0, 5, 0], sizes = [8, 8, 128], strides = [1, 1, 1]} : vector<8x14x128xf32> to vector<8x8x128xf32>
    %36 = vector.extract_strided_slice %2 {offsets = [5, 0], sizes = [1, 128], strides = [1, 1]} : vector<49x128xf32> to vector<1x128xf32>
    %37 = vector.shape_cast %36 : vector<1x128xf32> to vector<1x1x128xf32>
    %38 = vector.broadcast %37 : vector<1x1x128xf32> to vector<8x8x128xf32>
    %39 = arith.mulf %35, %38 : vector<8x8x128xf32>
    %40 = arith.addf %34, %39 : vector<8x8x128xf32>
    %41 = vector.extract_strided_slice %4 {offsets = [0, 6, 0], sizes = [8, 8, 128], strides = [1, 1, 1]} : vector<8x14x128xf32> to vector<8x8x128xf32>
    %42 = vector.extract_strided_slice %2 {offsets = [6, 0], sizes = [1, 128], strides = [1, 1]} : vector<49x128xf32> to vector<1x128xf32>
    %43 = vector.shape_cast %42 : vector<1x128xf32> to vector<1x1x128xf32>
    %44 = vector.broadcast %43 : vector<1x1x128xf32> to vector<8x8x128xf32>
    %45 = arith.mulf %41, %44 : vector<8x8x128xf32>
    %46 = arith.addf %40, %45 : vector<8x8x128xf32>
    %47 = vector.extract_strided_slice %1 {offsets = [1, 0, 0], sizes = [8, 14, 128], strides = [1, 1, 1]} : vector<14x14x128xf32> to vector<8x14x128xf32>
    %48 = vector.extract_strided_slice %47 {offsets = [0, 0, 0], sizes = [8, 8, 128], strides = [1, 1, 1]} : vector<8x14x128xf32> to vector<8x8x128xf32>
    %49 = vector.extract_strided_slice %2 {offsets = [7, 0], sizes = [1, 128], strides = [1, 1]} : vector<49x128xf32> to vector<1x128xf32>
    %50 = vector.shape_cast %49 : vector<1x128xf32> to vector<1x1x128xf32>
    %51 = vector.broadcast %50 : vector<1x1x128xf32> to vector<8x8x128xf32>
    %52 = arith.mulf %48, %51 : vector<8x8x128xf32>
    %53 = arith.addf %46, %52 : vector<8x8x128xf32>
    %54 = vector.extract_strided_slice %47 {offsets = [0, 1, 0], sizes = [8, 8, 128], strides = [1, 1, 1]} : vector<8x14x128xf32> to vector<8x8x128xf32>
    %55 = vector.extract_strided_slice %2 {offsets = [8, 0], sizes = [1, 128], strides = [1, 1]} : vector<49x128xf32> to vector<1x128xf32>
    %56 = vector.shape_cast %55 : vector<1x128xf32> to vector<1x1x128xf32>
    %57 = vector.broadcast %56 : vector<1x1x128xf32> to vector<8x8x128xf32>
    %58 = arith.mulf %54, %57 : vector<8x8x128xf32>
    %59 = arith.addf %53, %58 : vector<8x8x128xf32>
    %60 = vector.extract_strided_slice %47 {offsets = [0, 2, 0], sizes = [8, 8, 128], strides = [1, 1, 1]} : vector<8x14x128xf32> to vector<8x8x128xf32>
    %61 = vector.extract_strided_slice %2 {offsets = [9, 0], sizes = [1, 128], strides = [1, 1]} : vector<49x128xf32> to vector<1x128xf32>
    %62 = vector.shape_cast %61 : vector<1x128xf32> to vector<1x1x128xf32>
    %63 = vector.broadcast %62 : vector<1x1x128xf32> to vector<8x8x128xf32>
    %64 = arith.mulf %60, %63 : vector<8x8x128xf32>
    %65 = arith.addf %59, %64 : vector<8x8x128xf32>
    %66 = vector.extract_strided_slice %47 {offsets = [0, 3, 0], sizes = [8, 8, 128], strides = [1, 1, 1]} : vector<8x14x128xf32> to vector<8x8x128xf32>
    %67 = vector.extract_strided_slice %2 {offsets = [10, 0], sizes = [1, 128], strides = [1, 1]} : vector<49x128xf32> to vector<1x128xf32>
    %68 = vector.shape_cast %67 : vector<1x128xf32> to vector<1x1x128xf32>
    %69 = vector.broadcast %68 : vector<1x1x128xf32> to vector<8x8x128xf32>
    %70 = arith.mulf %66, %69 : vector<8x8x128xf32>
    %71 = arith.addf %65, %70 : vector<8x8x128xf32>
    %72 = vector.extract_strided_slice %47 {offsets = [0, 4, 0], sizes = [8, 8, 128], strides = [1, 1, 1]} : vector<8x14x128xf32> to vector<8x8x128xf32>
    %73 = vector.extract_strided_slice %2 {offsets = [11, 0], sizes = [1, 128], strides = [1, 1]} : vector<49x128xf32> to vector<1x128xf32>
    %74 = vector.shape_cast %73 : vector<1x128xf32> to vector<1x1x128xf32>
    %75 = vector.broadcast %74 : vector<1x1x128xf32> to vector<8x8x128xf32>
    %76 = arith.mulf %72, %75 : vector<8x8x128xf32>
    %77 = arith.addf %71, %76 : vector<8x8x128xf32>
    %78 = vector.extract_strided_slice %47 {offsets = [0, 5, 0], sizes = [8, 8, 128], strides = [1, 1, 1]} : vector<8x14x128xf32> to vector<8x8x128xf32>
    %79 = vector.extract_strided_slice %2 {offsets = [12, 0], sizes = [1, 128], strides = [1, 1]} : vector<49x128xf32> to vector<1x128xf32>
    %80 = vector.shape_cast %79 : vector<1x128xf32> to vector<1x1x128xf32>
    %81 = vector.broadcast %80 : vector<1x1x128xf32> to vector<8x8x128xf32>
    %82 = arith.mulf %78, %81 : vector<8x8x128xf32>
    %83 = arith.addf %77, %82 : vector<8x8x128xf32>
    %84 = vector.extract_strided_slice %47 {offsets = [0, 6, 0], sizes = [8, 8, 128], strides = [1, 1, 1]} : vector<8x14x128xf32> to vector<8x8x128xf32>
    %85 = vector.extract_strided_slice %2 {offsets = [13, 0], sizes = [1, 128], strides = [1, 1]} : vector<49x128xf32> to vector<1x128xf32>
    %86 = vector.shape_cast %85 : vector<1x128xf32> to vector<1x1x128xf32>
    %87 = vector.broadcast %86 : vector<1x1x128xf32> to vector<8x8x128xf32>
    %88 = arith.mulf %84, %87 : vector<8x8x128xf32>
    %89 = arith.addf %83, %88 : vector<8x8x128xf32>
    %90 = vector.extract_strided_slice %1 {offsets = [2, 0, 0], sizes = [8, 14, 128], strides = [1, 1, 1]} : vector<14x14x128xf32> to vector<8x14x128xf32>
    %91 = vector.extract_strided_slice %90 {offsets = [0, 0, 0], sizes = [8, 8, 128], strides = [1, 1, 1]} : vector<8x14x128xf32> to vector<8x8x128xf32>
    %92 = vector.extract_strided_slice %2 {offsets = [14, 0], sizes = [1, 128], strides = [1, 1]} : vector<49x128xf32> to vector<1x128xf32>
    %93 = vector.shape_cast %92 : vector<1x128xf32> to vector<1x1x128xf32>
    %94 = vector.broadcast %93 : vector<1x1x128xf32> to vector<8x8x128xf32>
    %95 = arith.mulf %91, %94 : vector<8x8x128xf32>
    %96 = arith.addf %89, %95 : vector<8x8x128xf32>
    %97 = vector.extract_strided_slice %90 {offsets = [0, 1, 0], sizes = [8, 8, 128], strides = [1, 1, 1]} : vector<8x14x128xf32> to vector<8x8x128xf32>
    %98 = vector.extract_strided_slice %2 {offsets = [15, 0], sizes = [1, 128], strides = [1, 1]} : vector<49x128xf32> to vector<1x128xf32>
    %99 = vector.shape_cast %98 : vector<1x128xf32> to vector<1x1x128xf32>
    %100 = vector.broadcast %99 : vector<1x1x128xf32> to vector<8x8x128xf32>
    %101 = arith.mulf %97, %100 : vector<8x8x128xf32>
    %102 = arith.addf %96, %101 : vector<8x8x128xf32>
    %103 = vector.extract_strided_slice %90 {offsets = [0, 2, 0], sizes = [8, 8, 128], strides = [1, 1, 1]} : vector<8x14x128xf32> to vector<8x8x128xf32>
    %104 = vector.extract_strided_slice %2 {offsets = [16, 0], sizes = [1, 128], strides = [1, 1]} : vector<49x128xf32> to vector<1x128xf32>
    %105 = vector.shape_cast %104 : vector<1x128xf32> to vector<1x1x128xf32>
    %106 = vector.broadcast %105 : vector<1x1x128xf32> to vector<8x8x128xf32>
    %107 = arith.mulf %103, %106 : vector<8x8x128xf32>
    %108 = arith.addf %102, %107 : vector<8x8x128xf32>
    %109 = vector.extract_strided_slice %90 {offsets = [0, 3, 0], sizes = [8, 8, 128], strides = [1, 1, 1]} : vector<8x14x128xf32> to vector<8x8x128xf32>
    %110 = vector.extract_strided_slice %2 {offsets = [17, 0], sizes = [1, 128], strides = [1, 1]} : vector<49x128xf32> to vector<1x128xf32>
    %111 = vector.shape_cast %110 : vector<1x128xf32> to vector<1x1x128xf32>
    %112 = vector.broadcast %111 : vector<1x1x128xf32> to vector<8x8x128xf32>
    %113 = arith.mulf %109, %112 : vector<8x8x128xf32>
    %114 = arith.addf %108, %113 : vector<8x8x128xf32>
    %115 = vector.extract_strided_slice %90 {offsets = [0, 4, 0], sizes = [8, 8, 128], strides = [1, 1, 1]} : vector<8x14x128xf32> to vector<8x8x128xf32>
    %116 = vector.extract_strided_slice %2 {offsets = [18, 0], sizes = [1, 128], strides = [1, 1]} : vector<49x128xf32> to vector<1x128xf32>
    %117 = vector.shape_cast %116 : vector<1x128xf32> to vector<1x1x128xf32>
    %118 = vector.broadcast %117 : vector<1x1x128xf32> to vector<8x8x128xf32>
    %119 = arith.mulf %115, %118 : vector<8x8x128xf32>
    %120 = arith.addf %114, %119 : vector<8x8x128xf32>
    %121 = vector.extract_strided_slice %90 {offsets = [0, 5, 0], sizes = [8, 8, 128], strides = [1, 1, 1]} : vector<8x14x128xf32> to vector<8x8x128xf32>
    %122 = vector.extract_strided_slice %2 {offsets = [19, 0], sizes = [1, 128], strides = [1, 1]} : vector<49x128xf32> to vector<1x128xf32>
    %123 = vector.shape_cast %122 : vector<1x128xf32> to vector<1x1x128xf32>
    %124 = vector.broadcast %123 : vector<1x1x128xf32> to vector<8x8x128xf32>
    %125 = arith.mulf %121, %124 : vector<8x8x128xf32>
    %126 = arith.addf %120, %125 : vector<8x8x128xf32>
    %127 = vector.extract_strided_slice %90 {offsets = [0, 6, 0], sizes = [8, 8, 128], strides = [1, 1, 1]} : vector<8x14x128xf32> to vector<8x8x128xf32>
    %128 = vector.extract_strided_slice %2 {offsets = [20, 0], sizes = [1, 128], strides = [1, 1]} : vector<49x128xf32> to vector<1x128xf32>
    %129 = vector.shape_cast %128 : vector<1x128xf32> to vector<1x1x128xf32>
    %130 = vector.broadcast %129 : vector<1x1x128xf32> to vector<8x8x128xf32>
    %131 = arith.mulf %127, %130 : vector<8x8x128xf32>
    %132 = arith.addf %126, %131 : vector<8x8x128xf32>
    %133 = vector.extract_strided_slice %1 {offsets = [3, 0, 0], sizes = [8, 14, 128], strides = [1, 1, 1]} : vector<14x14x128xf32> to vector<8x14x128xf32>
    %134 = vector.extract_strided_slice %133 {offsets = [0, 0, 0], sizes = [8, 8, 128], strides = [1, 1, 1]} : vector<8x14x128xf32> to vector<8x8x128xf32>
    %135 = vector.extract_strided_slice %2 {offsets = [21, 0], sizes = [1, 128], strides = [1, 1]} : vector<49x128xf32> to vector<1x128xf32>
    %136 = vector.shape_cast %135 : vector<1x128xf32> to vector<1x1x128xf32>
    %137 = vector.broadcast %136 : vector<1x1x128xf32> to vector<8x8x128xf32>
    %138 = arith.mulf %134, %137 : vector<8x8x128xf32>
    %139 = arith.addf %132, %138 : vector<8x8x128xf32>
    %140 = vector.extract_strided_slice %133 {offsets = [0, 1, 0], sizes = [8, 8, 128], strides = [1, 1, 1]} : vector<8x14x128xf32> to vector<8x8x128xf32>
    %141 = vector.extract_strided_slice %2 {offsets = [22, 0], sizes = [1, 128], strides = [1, 1]} : vector<49x128xf32> to vector<1x128xf32>
    %142 = vector.shape_cast %141 : vector<1x128xf32> to vector<1x1x128xf32>
    %143 = vector.broadcast %142 : vector<1x1x128xf32> to vector<8x8x128xf32>
    %144 = arith.mulf %140, %143 : vector<8x8x128xf32>
    %145 = arith.addf %139, %144 : vector<8x8x128xf32>
    %146 = vector.extract_strided_slice %133 {offsets = [0, 2, 0], sizes = [8, 8, 128], strides = [1, 1, 1]} : vector<8x14x128xf32> to vector<8x8x128xf32>
    %147 = vector.extract_strided_slice %2 {offsets = [23, 0], sizes = [1, 128], strides = [1, 1]} : vector<49x128xf32> to vector<1x128xf32>
    %148 = vector.shape_cast %147 : vector<1x128xf32> to vector<1x1x128xf32>
    %149 = vector.broadcast %148 : vector<1x1x128xf32> to vector<8x8x128xf32>
    %150 = arith.mulf %146, %149 : vector<8x8x128xf32>
    %151 = arith.addf %145, %150 : vector<8x8x128xf32>
    %152 = vector.extract_strided_slice %133 {offsets = [0, 3, 0], sizes = [8, 8, 128], strides = [1, 1, 1]} : vector<8x14x128xf32> to vector<8x8x128xf32>
    %153 = vector.extract_strided_slice %2 {offsets = [24, 0], sizes = [1, 128], strides = [1, 1]} : vector<49x128xf32> to vector<1x128xf32>
    %154 = vector.shape_cast %153 : vector<1x128xf32> to vector<1x1x128xf32>
    %155 = vector.broadcast %154 : vector<1x1x128xf32> to vector<8x8x128xf32>
    %156 = arith.mulf %152, %155 : vector<8x8x128xf32>
    %157 = arith.addf %151, %156 : vector<8x8x128xf32>
    %158 = vector.extract_strided_slice %133 {offsets = [0, 4, 0], sizes = [8, 8, 128], strides = [1, 1, 1]} : vector<8x14x128xf32> to vector<8x8x128xf32>
    %159 = vector.extract_strided_slice %2 {offsets = [25, 0], sizes = [1, 128], strides = [1, 1]} : vector<49x128xf32> to vector<1x128xf32>
    %160 = vector.shape_cast %159 : vector<1x128xf32> to vector<1x1x128xf32>
    %161 = vector.broadcast %160 : vector<1x1x128xf32> to vector<8x8x128xf32>
    %162 = arith.mulf %158, %161 : vector<8x8x128xf32>
    %163 = arith.addf %157, %162 : vector<8x8x128xf32>
    %164 = vector.extract_strided_slice %133 {offsets = [0, 5, 0], sizes = [8, 8, 128], strides = [1, 1, 1]} : vector<8x14x128xf32> to vector<8x8x128xf32>
    %165 = vector.extract_strided_slice %2 {offsets = [26, 0], sizes = [1, 128], strides = [1, 1]} : vector<49x128xf32> to vector<1x128xf32>
    %166 = vector.shape_cast %165 : vector<1x128xf32> to vector<1x1x128xf32>
    %167 = vector.broadcast %166 : vector<1x1x128xf32> to vector<8x8x128xf32>
    %168 = arith.mulf %164, %167 : vector<8x8x128xf32>
    %169 = arith.addf %163, %168 : vector<8x8x128xf32>
    %170 = vector.extract_strided_slice %133 {offsets = [0, 6, 0], sizes = [8, 8, 128], strides = [1, 1, 1]} : vector<8x14x128xf32> to vector<8x8x128xf32>
    %171 = vector.extract_strided_slice %2 {offsets = [27, 0], sizes = [1, 128], strides = [1, 1]} : vector<49x128xf32> to vector<1x128xf32>
    %172 = vector.shape_cast %171 : vector<1x128xf32> to vector<1x1x128xf32>
    %173 = vector.broadcast %172 : vector<1x1x128xf32> to vector<8x8x128xf32>
    %174 = arith.mulf %170, %173 : vector<8x8x128xf32>
    %175 = arith.addf %169, %174 : vector<8x8x128xf32>
    %176 = vector.extract_strided_slice %1 {offsets = [4, 0, 0], sizes = [8, 14, 128], strides = [1, 1, 1]} : vector<14x14x128xf32> to vector<8x14x128xf32>
    %177 = vector.extract_strided_slice %176 {offsets = [0, 0, 0], sizes = [8, 8, 128], strides = [1, 1, 1]} : vector<8x14x128xf32> to vector<8x8x128xf32>
    %178 = vector.extract_strided_slice %2 {offsets = [28, 0], sizes = [1, 128], strides = [1, 1]} : vector<49x128xf32> to vector<1x128xf32>
    %179 = vector.shape_cast %178 : vector<1x128xf32> to vector<1x1x128xf32>
    %180 = vector.broadcast %179 : vector<1x1x128xf32> to vector<8x8x128xf32>
    %181 = arith.mulf %177, %180 : vector<8x8x128xf32>
    %182 = arith.addf %175, %181 : vector<8x8x128xf32>
    %183 = vector.extract_strided_slice %176 {offsets = [0, 1, 0], sizes = [8, 8, 128], strides = [1, 1, 1]} : vector<8x14x128xf32> to vector<8x8x128xf32>
    %184 = vector.extract_strided_slice %2 {offsets = [29, 0], sizes = [1, 128], strides = [1, 1]} : vector<49x128xf32> to vector<1x128xf32>
    %185 = vector.shape_cast %184 : vector<1x128xf32> to vector<1x1x128xf32>
    %186 = vector.broadcast %185 : vector<1x1x128xf32> to vector<8x8x128xf32>
    %187 = arith.mulf %183, %186 : vector<8x8x128xf32>
    %188 = arith.addf %182, %187 : vector<8x8x128xf32>
    %189 = vector.extract_strided_slice %176 {offsets = [0, 2, 0], sizes = [8, 8, 128], strides = [1, 1, 1]} : vector<8x14x128xf32> to vector<8x8x128xf32>
    %190 = vector.extract_strided_slice %2 {offsets = [30, 0], sizes = [1, 128], strides = [1, 1]} : vector<49x128xf32> to vector<1x128xf32>
    %191 = vector.shape_cast %190 : vector<1x128xf32> to vector<1x1x128xf32>
    %192 = vector.broadcast %191 : vector<1x1x128xf32> to vector<8x8x128xf32>
    %193 = arith.mulf %189, %192 : vector<8x8x128xf32>
    %194 = arith.addf %188, %193 : vector<8x8x128xf32>
    %195 = vector.extract_strided_slice %176 {offsets = [0, 3, 0], sizes = [8, 8, 128], strides = [1, 1, 1]} : vector<8x14x128xf32> to vector<8x8x128xf32>
    %196 = vector.extract_strided_slice %2 {offsets = [31, 0], sizes = [1, 128], strides = [1, 1]} : vector<49x128xf32> to vector<1x128xf32>
    %197 = vector.shape_cast %196 : vector<1x128xf32> to vector<1x1x128xf32>
    %198 = vector.broadcast %197 : vector<1x1x128xf32> to vector<8x8x128xf32>
    %199 = arith.mulf %195, %198 : vector<8x8x128xf32>
    %200 = arith.addf %194, %199 : vector<8x8x128xf32>
    %201 = vector.extract_strided_slice %176 {offsets = [0, 4, 0], sizes = [8, 8, 128], strides = [1, 1, 1]} : vector<8x14x128xf32> to vector<8x8x128xf32>
    %202 = vector.extract_strided_slice %2 {offsets = [32, 0], sizes = [1, 128], strides = [1, 1]} : vector<49x128xf32> to vector<1x128xf32>
    %203 = vector.shape_cast %202 : vector<1x128xf32> to vector<1x1x128xf32>
    %204 = vector.broadcast %203 : vector<1x1x128xf32> to vector<8x8x128xf32>
    %205 = arith.mulf %201, %204 : vector<8x8x128xf32>
    %206 = arith.addf %200, %205 : vector<8x8x128xf32>
    %207 = vector.extract_strided_slice %176 {offsets = [0, 5, 0], sizes = [8, 8, 128], strides = [1, 1, 1]} : vector<8x14x128xf32> to vector<8x8x128xf32>
    %208 = vector.extract_strided_slice %2 {offsets = [33, 0], sizes = [1, 128], strides = [1, 1]} : vector<49x128xf32> to vector<1x128xf32>
    %209 = vector.shape_cast %208 : vector<1x128xf32> to vector<1x1x128xf32>
    %210 = vector.broadcast %209 : vector<1x1x128xf32> to vector<8x8x128xf32>
    %211 = arith.mulf %207, %210 : vector<8x8x128xf32>
    %212 = arith.addf %206, %211 : vector<8x8x128xf32>
    %213 = vector.extract_strided_slice %176 {offsets = [0, 6, 0], sizes = [8, 8, 128], strides = [1, 1, 1]} : vector<8x14x128xf32> to vector<8x8x128xf32>
    %214 = vector.extract_strided_slice %2 {offsets = [34, 0], sizes = [1, 128], strides = [1, 1]} : vector<49x128xf32> to vector<1x128xf32>
    %215 = vector.shape_cast %214 : vector<1x128xf32> to vector<1x1x128xf32>
    %216 = vector.broadcast %215 : vector<1x1x128xf32> to vector<8x8x128xf32>
    %217 = arith.mulf %213, %216 : vector<8x8x128xf32>
    %218 = arith.addf %212, %217 : vector<8x8x128xf32>
    %219 = vector.extract_strided_slice %1 {offsets = [5, 0, 0], sizes = [8, 14, 128], strides = [1, 1, 1]} : vector<14x14x128xf32> to vector<8x14x128xf32>
    %220 = vector.extract_strided_slice %219 {offsets = [0, 0, 0], sizes = [8, 8, 128], strides = [1, 1, 1]} : vector<8x14x128xf32> to vector<8x8x128xf32>
    %221 = vector.extract_strided_slice %2 {offsets = [35, 0], sizes = [1, 128], strides = [1, 1]} : vector<49x128xf32> to vector<1x128xf32>
    %222 = vector.shape_cast %221 : vector<1x128xf32> to vector<1x1x128xf32>
    %223 = vector.broadcast %222 : vector<1x1x128xf32> to vector<8x8x128xf32>
    %224 = arith.mulf %220, %223 : vector<8x8x128xf32>
    %225 = arith.addf %218, %224 : vector<8x8x128xf32>
    %226 = vector.extract_strided_slice %219 {offsets = [0, 1, 0], sizes = [8, 8, 128], strides = [1, 1, 1]} : vector<8x14x128xf32> to vector<8x8x128xf32>
    %227 = vector.extract_strided_slice %2 {offsets = [36, 0], sizes = [1, 128], strides = [1, 1]} : vector<49x128xf32> to vector<1x128xf32>
    %228 = vector.shape_cast %227 : vector<1x128xf32> to vector<1x1x128xf32>
    %229 = vector.broadcast %228 : vector<1x1x128xf32> to vector<8x8x128xf32>
    %230 = arith.mulf %226, %229 : vector<8x8x128xf32>
    %231 = arith.addf %225, %230 : vector<8x8x128xf32>
    %232 = vector.extract_strided_slice %219 {offsets = [0, 2, 0], sizes = [8, 8, 128], strides = [1, 1, 1]} : vector<8x14x128xf32> to vector<8x8x128xf32>
    %233 = vector.extract_strided_slice %2 {offsets = [37, 0], sizes = [1, 128], strides = [1, 1]} : vector<49x128xf32> to vector<1x128xf32>
    %234 = vector.shape_cast %233 : vector<1x128xf32> to vector<1x1x128xf32>
    %235 = vector.broadcast %234 : vector<1x1x128xf32> to vector<8x8x128xf32>
    %236 = arith.mulf %232, %235 : vector<8x8x128xf32>
    %237 = arith.addf %231, %236 : vector<8x8x128xf32>
    %238 = vector.extract_strided_slice %219 {offsets = [0, 3, 0], sizes = [8, 8, 128], strides = [1, 1, 1]} : vector<8x14x128xf32> to vector<8x8x128xf32>
    %239 = vector.extract_strided_slice %2 {offsets = [38, 0], sizes = [1, 128], strides = [1, 1]} : vector<49x128xf32> to vector<1x128xf32>
    %240 = vector.shape_cast %239 : vector<1x128xf32> to vector<1x1x128xf32>
    %241 = vector.broadcast %240 : vector<1x1x128xf32> to vector<8x8x128xf32>
    %242 = arith.mulf %238, %241 : vector<8x8x128xf32>
    %243 = arith.addf %237, %242 : vector<8x8x128xf32>
    %244 = vector.extract_strided_slice %219 {offsets = [0, 4, 0], sizes = [8, 8, 128], strides = [1, 1, 1]} : vector<8x14x128xf32> to vector<8x8x128xf32>
    %245 = vector.extract_strided_slice %2 {offsets = [39, 0], sizes = [1, 128], strides = [1, 1]} : vector<49x128xf32> to vector<1x128xf32>
    %246 = vector.shape_cast %245 : vector<1x128xf32> to vector<1x1x128xf32>
    %247 = vector.broadcast %246 : vector<1x1x128xf32> to vector<8x8x128xf32>
    %248 = arith.mulf %244, %247 : vector<8x8x128xf32>
    %249 = arith.addf %243, %248 : vector<8x8x128xf32>
    %250 = vector.extract_strided_slice %219 {offsets = [0, 5, 0], sizes = [8, 8, 128], strides = [1, 1, 1]} : vector<8x14x128xf32> to vector<8x8x128xf32>
    %251 = vector.extract_strided_slice %2 {offsets = [40, 0], sizes = [1, 128], strides = [1, 1]} : vector<49x128xf32> to vector<1x128xf32>
    %252 = vector.shape_cast %251 : vector<1x128xf32> to vector<1x1x128xf32>
    %253 = vector.broadcast %252 : vector<1x1x128xf32> to vector<8x8x128xf32>
    %254 = arith.mulf %250, %253 : vector<8x8x128xf32>
    %255 = arith.addf %249, %254 : vector<8x8x128xf32>
    %256 = vector.extract_strided_slice %219 {offsets = [0, 6, 0], sizes = [8, 8, 128], strides = [1, 1, 1]} : vector<8x14x128xf32> to vector<8x8x128xf32>
    %257 = vector.extract_strided_slice %2 {offsets = [41, 0], sizes = [1, 128], strides = [1, 1]} : vector<49x128xf32> to vector<1x128xf32>
    %258 = vector.shape_cast %257 : vector<1x128xf32> to vector<1x1x128xf32>
    %259 = vector.broadcast %258 : vector<1x1x128xf32> to vector<8x8x128xf32>
    %260 = arith.mulf %256, %259 : vector<8x8x128xf32>
    %261 = arith.addf %255, %260 : vector<8x8x128xf32>
    %262 = vector.extract_strided_slice %1 {offsets = [6, 0, 0], sizes = [8, 14, 128], strides = [1, 1, 1]} : vector<14x14x128xf32> to vector<8x14x128xf32>
    %263 = vector.extract_strided_slice %262 {offsets = [0, 0, 0], sizes = [8, 8, 128], strides = [1, 1, 1]} : vector<8x14x128xf32> to vector<8x8x128xf32>
    %264 = vector.extract_strided_slice %2 {offsets = [42, 0], sizes = [1, 128], strides = [1, 1]} : vector<49x128xf32> to vector<1x128xf32>
    %265 = vector.shape_cast %264 : vector<1x128xf32> to vector<1x1x128xf32>
    %266 = vector.broadcast %265 : vector<1x1x128xf32> to vector<8x8x128xf32>
    %267 = arith.mulf %263, %266 : vector<8x8x128xf32>
    %268 = arith.addf %261, %267 : vector<8x8x128xf32>
    %269 = vector.extract_strided_slice %262 {offsets = [0, 1, 0], sizes = [8, 8, 128], strides = [1, 1, 1]} : vector<8x14x128xf32> to vector<8x8x128xf32>
    %270 = vector.extract_strided_slice %2 {offsets = [43, 0], sizes = [1, 128], strides = [1, 1]} : vector<49x128xf32> to vector<1x128xf32>
    %271 = vector.shape_cast %270 : vector<1x128xf32> to vector<1x1x128xf32>
    %272 = vector.broadcast %271 : vector<1x1x128xf32> to vector<8x8x128xf32>
    %273 = arith.mulf %269, %272 : vector<8x8x128xf32>
    %274 = arith.addf %268, %273 : vector<8x8x128xf32>
    %275 = vector.extract_strided_slice %262 {offsets = [0, 2, 0], sizes = [8, 8, 128], strides = [1, 1, 1]} : vector<8x14x128xf32> to vector<8x8x128xf32>
    %276 = vector.extract_strided_slice %2 {offsets = [44, 0], sizes = [1, 128], strides = [1, 1]} : vector<49x128xf32> to vector<1x128xf32>
    %277 = vector.shape_cast %276 : vector<1x128xf32> to vector<1x1x128xf32>
    %278 = vector.broadcast %277 : vector<1x1x128xf32> to vector<8x8x128xf32>
    %279 = arith.mulf %275, %278 : vector<8x8x128xf32>
    %280 = arith.addf %274, %279 : vector<8x8x128xf32>
    %281 = vector.extract_strided_slice %262 {offsets = [0, 3, 0], sizes = [8, 8, 128], strides = [1, 1, 1]} : vector<8x14x128xf32> to vector<8x8x128xf32>
    %282 = vector.extract_strided_slice %2 {offsets = [45, 0], sizes = [1, 128], strides = [1, 1]} : vector<49x128xf32> to vector<1x128xf32>
    %283 = vector.shape_cast %282 : vector<1x128xf32> to vector<1x1x128xf32>
    %284 = vector.broadcast %283 : vector<1x1x128xf32> to vector<8x8x128xf32>
    %285 = arith.mulf %281, %284 : vector<8x8x128xf32>
    %286 = arith.addf %280, %285 : vector<8x8x128xf32>
    %287 = vector.extract_strided_slice %262 {offsets = [0, 4, 0], sizes = [8, 8, 128], strides = [1, 1, 1]} : vector<8x14x128xf32> to vector<8x8x128xf32>
    %288 = vector.extract_strided_slice %2 {offsets = [46, 0], sizes = [1, 128], strides = [1, 1]} : vector<49x128xf32> to vector<1x128xf32>
    %289 = vector.shape_cast %288 : vector<1x128xf32> to vector<1x1x128xf32>
    %290 = vector.broadcast %289 : vector<1x1x128xf32> to vector<8x8x128xf32>
    %291 = arith.mulf %287, %290 : vector<8x8x128xf32>
    %292 = arith.addf %286, %291 : vector<8x8x128xf32>
    %293 = vector.extract_strided_slice %262 {offsets = [0, 5, 0], sizes = [8, 8, 128], strides = [1, 1, 1]} : vector<8x14x128xf32> to vector<8x8x128xf32>
    %294 = vector.extract_strided_slice %2 {offsets = [47, 0], sizes = [1, 128], strides = [1, 1]} : vector<49x128xf32> to vector<1x128xf32>
    %295 = vector.shape_cast %294 : vector<1x128xf32> to vector<1x1x128xf32>
    %296 = vector.broadcast %295 : vector<1x1x128xf32> to vector<8x8x128xf32>
    %297 = arith.mulf %293, %296 : vector<8x8x128xf32>
    %298 = arith.addf %292, %297 : vector<8x8x128xf32>
    %299 = vector.extract_strided_slice %262 {offsets = [0, 6, 0], sizes = [8, 8, 128], strides = [1, 1, 1]} : vector<8x14x128xf32> to vector<8x8x128xf32>
    %300 = vector.extract_strided_slice %2 {offsets = [48, 0], sizes = [1, 128], strides = [1, 1]} : vector<49x128xf32> to vector<1x128xf32>
    %301 = vector.shape_cast %300 : vector<1x128xf32> to vector<1x1x128xf32>
    %302 = vector.broadcast %301 : vector<1x1x128xf32> to vector<8x8x128xf32>
    %303 = arith.mulf %299, %302 : vector<8x8x128xf32>
    %304 = arith.addf %298, %303 : vector<8x8x128xf32>
    %c0_5 = arith.constant 0 : index
    %c0_6 = arith.constant 0 : index
    %305 = vector.load %arg4[%c0_5, %c0_6] : memref<1x128xf32, #tpu.memory_space<vmem>>, vector<1x128xf32>
    %306 = vector.shape_cast %305 : vector<1x128xf32> to vector<1x1x128xf32>
    %307 = vector.broadcast %306 : vector<1x1x128xf32> to vector<8x8x128xf32>
    %308 = arith.addf %304, %307 : vector<8x8x128xf32>
    %c0_7 = arith.constant 0 : index
    %c0_8 = arith.constant 0 : index
    %c0_9 = arith.constant 0 : index
    %c0_10 = arith.constant 0 : index
    %309 = vector.load %arg5[%c0_7, %c0_8, %c0_9, %c0_10] : memref<1x8x8x128xf32, #tpu.memory_space<vmem>>, vector<1x8x8x128xf32>
    %310 = vector.shape_cast %309 : vector<1x8x8x128xf32> to vector<8x8x128xf32>
    %311 = vector.shape_cast %308 : vector<8x8x128xf32> to vector<1x8x8x128xf32>
    tpu.vector_store %arg5[%c0_7, %c0_8, %c0_9, %c0_10], %311 {strides = array<i32>} : memref<1x8x8x128xf32, #tpu.memory_space<vmem>>, vector<1x8x8x128xf32>,
    return
  }
  func.func @transform_0(%arg0: i32, %arg1: i32) -> (i32, i32, i32, i32) {
    %c0_i32 = arith.constant 0 : i32
    %c0_i32_0 = arith.constant 0 : i32
    %c0_i32_1 = arith.constant 0 : i32
    return %arg0, %c0_i32, %c0_i32_0, %arg1 : i32, i32, i32, i32
  }
  func.func @transform_1(%arg0: i32, %arg1: i32) -> (i32, i32) {
    %c0_i32 = arith.constant 0 : i32
    %c0_i32_0 = arith.constant 0 : i32
    return %c0_i32, %arg1 : i32, i32
  }
  func.func @transform_2(%arg0: i32, %arg1: i32) -> (i32, i32) {
    %c0_i32 = arith.constant 0 : i32
    %c0_i32_0 = arith.constant 0 : i32
    return %c0_i32, %arg1 : i32, i32
  }
  func.func @transform_3(%arg0: i32, %arg1: i32) -> (i32, i32, i32, i32) {
    %c0_i32 = arith.constant 0 : i32
    %c0_i32_0 = arith.constant 0 : i32
    %c0_i32_1 = arith.constant 0 : i32
    return %arg0, %c0_i32, %c0_i32_0, %arg1 : i32, i32, i32, i32
  }
}

</mosaic_0001>

<llo_original>
// kernel: ppeg_forward.1
$region0: #{ppeg_forward.1}
  #allocation0 [shape = 'u32[]', space=smem, size = 0x4, offset = 0x4, fixed_abs, tag = 'smem constant byte address 0x4 - core index']
  #allocation1 [shape = 'u32[72,128]{1,0:T(1,128)}', space=vmem, size = 0x9000, scoped, tag = 'internal scratch']
  %s0 = inlined_call_operand.vmem [shape: f32[2,14,14,128], index: 0, kind: input, shape index: {}]
  %s1 = inlined_call_operand.vmem [shape: f32[49,128], index: 1, kind: input, shape index: {}]
  %s2 = inlined_call_operand.vmem [shape: f32[1,128], index: 2, kind: input, shape index: {}]
  %s3 = inlined_call_operand.vmem [shape: f32[2,8,8,128], index: 3, kind: output, shape index: {}]
  %s4 = sld [smem:[#allocation0]]
  $region45: #{ppeg_forward.1} parent=0
    _
  %s6 = ssub.s32 1, %s4
  %s7 = scalar_select 0, %s6, %s4
  loop: start=0, step=1, limit=4
  $region2: #{ppeg_forward.1} parent=0 // loop_pre_header
    _
  $region3: #{ppeg_forward.1} parent=0 // loop_header
    %s9 = sphi 0, %s13
    %p10 = scmp.ge.s32.totalorder %s9, 4
    %s16 = sphi 0, %s28
    %s17 = sphi 0, %s24
    %s18 = sphi 0, %s16
    %s19 = sphi 0, %s17
    %s20 = sphi 0, %s18
    %s21 = sphi 0, %s19
    %s33 = sphi 0, %s35
    %s36 = sphi 0, %s33
    %s37 = sphi 0, %s36
    %s53 = sphi 0, %s37
    %s59 = sphi 0, %s61
    %s62 = sphi 0, %s59
    %s63 = sphi 0, %s62
    %s79 = sphi 0, %s63
    %s85 = sphi 0, %s87
    %s88 = sphi 0, %s85
    %s89 = sphi 0, %s88
    %s105 = sphi 0, %s89
    %s113 = sphi 0, %s115
    %s116 = sphi 0, %s113
    %s117 = sphi 0, %s116
    %s133 = sphi 0, %s117
  $region4: #{ppeg_forward.1} parent=0 // loop_header_branch
    %12 = sbr.rel (%p10) target = $region8
  $region5: #{ppeg_forward.1} parent=0 // loop_body
    %s14 = ssub.s32 %s9, 1
    %s15 = ssub.s32 %s9, 2
    %s22 = sadd.s32 1, %s17
    %p23 = scmp.ge.s32.totalorder %s22, 1
    %s24 = scalar_select %p23, 0, %s22
    %s25 = sadd.s32 1, %s16
    %s26 = scalar_select %p23, %s25, %s16
    %p27 = scmp.ge.s32.totalorder %s26, 2
    %s28 = scalar_select %p27, 0, %s26
    %s29 = ssub.s32 %s16, %s28
    %s30 = ssub.s32 %s17, %s24
    %s31 = sor.u32 %s29, %s30
    %p32 = scmp.eq.s32.totalorder %s31, 0
    %s34 = sadd.s32 %s33, 1
    %s35 = scalar_select %p32, %s33, %s34
    %p38 = pneg %p32
    %p39 = scmp.eq.s32.totalorder %s9, 1
    %p40 = por %p38, %p39
    %p41 = scmp.ne.s32.totalorder %s33, %s36
    %p42 = scmp.eq.s32.totalorder %s9, 0
    %p43 = por %p41, %p42
    %p44 = scmp.ne.s32.totalorder %s33, %s36
    %p45 = scmp.eq.s32.totalorder %s14, 1
    %p46 = por %p44, %p45
    %p47 = scmp.ne.s32.totalorder %s36, %s37
    %p48 = scmp.eq.s32.totalorder %s14, 0
    %p49 = por %p47, %p48
    %p50 = scmp.ne.s32.totalorder %s36, %s37
    %p51 = scmp.eq.s32.totalorder %s15, 1
    %p52 = por %p50, %p51
    %p54 = scmp.ne.s32.totalorder %s37, %s53
    %p55 = scmp.eq.s32.totalorder %s15, 0
    %p56 = por %p54, %p55
    %s57 = ssub.s32 %s17, %s24
    %p58 = scmp.eq.s32.totalorder %s57, 0
    %s60 = sadd.s32 %s59, 1
    %s61 = scalar_select %p58, %s59, %s60
    %p64 = pneg %p58
    %p65 = scmp.eq.s32.totalorder %s9, 1
    %p66 = por %p64, %p65
    %p67 = scmp.ne.s32.totalorder %s59, %s62
    %p68 = scmp.eq.s32.totalorder %s9, 0
    %p69 = por %p67, %p68
    %p70 = scmp.ne.s32.totalorder %s59, %s62
    %p71 = scmp.eq.s32.totalorder %s14, 1
    %p72 = por %p70, %p71
    %p73 = scmp.ne.s32.totalorder %s62, %s63
    %p74 = scmp.eq.s32.totalorder %s14, 0
    %p75 = por %p73, %p74
    %p76 = scmp.ne.s32.totalorder %s62, %s63
    %p77 = scmp.eq.s32.totalorder %s15, 1
    %p78 = por %p76, %p77
    %p80 = scmp.ne.s32.totalorder %s63, %s79
    %p81 = scmp.eq.s32.totalorder %s15, 0
    %p82 = por %p80, %p81
    %s83 = ssub.s32 %s17, %s24
    %p84 = scmp.eq.s32.totalorder %s83, 0
    %s86 = sadd.s32 %s85, 1
    %s87 = scalar_select %p84, %s85, %s86
    %p90 = pneg %p84
    %p91 = scmp.eq.s32.totalorder %s9, 1
    %p92 = por %p90, %p91
    %p93 = scmp.ne.s32.totalorder %s85, %s88
    %p94 = scmp.eq.s32.totalorder %s9, 0
    %p95 = por %p93, %p94
    %p96 = scmp.ne.s32.totalorder %s85, %s88
    %p97 = scmp.eq.s32.totalorder %s14, 1
    %p98 = por %p96, %p97
    %p99 = scmp.ne.s32.totalorder %s88, %s89
    %p100 = scmp.eq.s32.totalorder %s14, 0
    %p101 = por %p99, %p100
    %p102 = scmp.ne.s32.totalorder %s88, %s89
    %p103 = scmp.eq.s32.totalorder %s15, 1
    %p104 = por %p102, %p103
    %p106 = scmp.ne.s32.totalorder %s89, %s105
    %p107 = scmp.eq.s32.totalorder %s15, 0
    %p108 = por %p106, %p107
    %s109 = ssub.s32 %s16, %s28
    %s110 = ssub.s32 %s17, %s24
    %s111 = sor.u32 %s109, %s110
    %p112 = scmp.eq.s32.totalorder %s111, 0
    %s114 = sadd.s32 %s113, 1
    %s115 = scalar_select %p112, %s113, %s114
    %p118 = pneg %p112
    %p119 = scmp.eq.s32.totalorder %s9, 1
    %p120 = por %p118, %p119
    %p121 = scmp.ne.s32.totalorder %s113, %s116
    %p122 = scmp.eq.s32.totalorder %s9, 0
    %p123 = por %p121, %p122
    %p124 = scmp.ne.s32.totalorder %s113, %s116
    %p125 = scmp.eq.s32.totalorder %s14, 1
    %p126 = por %p124, %p125
    %p127 = scmp.ne.s32.totalorder %s116, %s117
    %p128 = scmp.eq.s32.totalorder %s14, 0
    %p129 = por %p127, %p128
    %p130 = scmp.ne.s32.totalorder %s116, %s117
    %p131 = scmp.eq.s32.totalorder %s15, 1
    %p132 = por %p130, %p131
    %p134 = scmp.ne.s32.totalorder %s117, %s133
    %p135 = scmp.eq.s32.totalorder %s15, 0
    %p136 = por %p134, %p135
    %p137 = scmp.le.s32.totalorder 1, %s9
    %p138 = scmp.lt.s32.totalorder %s9, 3
    %p139 = pnand %p137, %p138
    %p140 = pneg %p139
    // Predicated region
    $region9: #{ppeg_forward.1} parent=5 // pred_check
      _
    $region10: #{ppeg_forward.1} parent=5 // pred_check_branch
      %142 = sbr.rel (%p139) target = $region12
    $region11: #{ppeg_forward.1} parent=5 // pred_region
      %s143 = ssub.s32 %s9, 1
      // Predicated region
      $region13: #{ppeg_forward.1} parent=11 // pred_check
        %p144 = pneg %p75
      $region14: #{ppeg_forward.1} parent=11 // pred_check_branch
        %146 = sbr.rel (%p144) target = $region16
      $region15: #{ppeg_forward.1} parent=11 // pred_region
        %p147 = scmp.lt.s32.totalorder %s19, 0
        %s148 = scalar_select %p147, %s19, 0
        %s149 = smul.addr %s148, 8
        %s150 = scalar_lea.vmem %s1, %s149
      $region16: #{ppeg_forward.1} parent=11 // pred_fallthru
        _
      // Predicated region
      $region17: #{ppeg_forward.1} parent=11 // pred_check
        %p151 = pneg %p101
      $region18: #{ppeg_forward.1} parent=11 // pred_check_branch
        %153 = sbr.rel (%p151) target = $region20
      $region19: #{ppeg_forward.1} parent=11 // pred_region
        %p154 = scmp.lt.s32.totalorder %s19, 0
        %s155 = scalar_select %p154, %s19, 0
        %s156 = scalar_lea.vmem %s2, %s155
      $region20: #{ppeg_forward.1} parent=11 // pred_fallthru
        _
    $region12: #{ppeg_forward.1} parent=5 // pred_fallthru
      _
    %p157 = scmp.lt.s32.totalorder %s9, 2
    // Predicated region
    $region21: #{ppeg_forward.1} parent=5 // pred_check
      %p158 = pneg %p157
    $region22: #{ppeg_forward.1} parent=5 // pred_check_branch
      %160 = sbr.rel (%p158) target = $region24
    $region23: #{ppeg_forward.1} parent=5 // pred_region
      // Predicated region
      $region25: #{ppeg_forward.1} parent=23 // pred_check
        %p161 = pneg %p43
      $region26: #{ppeg_forward.1} parent=23 // pred_check_branch
        %163 = sbr.rel (%p161) target = $region28
      $region27: #{ppeg_forward.1} parent=23 // pred_region
        %p164 = scmp.lt.s32.totalorder %s16, 1
        %s165 = scalar_select %p164, %s16, 1
        %p166 = scmp.lt.s32.totalorder %s17, 0
        %s167 = scalar_select %p166, %s17, 0
        %s168 = smul.addr %s165, 28
        %s169 = sadd.s32 %s167, %s168
        %s170 = smul.addr %s169, 8
        %s171 = scalar_lea.vmem %s0, %s170
      $region28: #{ppeg_forward.1} parent=23 // pred_fallthru
        _
    $region24: #{ppeg_forward.1} parent=5 // pred_fallthru
      _
    %p172 = scmp.le.s32.totalorder 1, %s9
    %p173 = scmp.lt.s32.totalorder %s9, 3
    %p174 = pnand %p172, %p173
    %p175 = pneg %p174
    // Predicated region
    $region29: #{ppeg_forward.1} parent=5 // pred_check
      _
    $region30: #{ppeg_forward.1} parent=5 // pred_check_branch
      %177 = sbr.rel (%p174) target = $region32
    $region31: #{ppeg_forward.1} parent=5 // pred_region
      %s178 = ssub.s32 %s9, 1
      %p179 = scmp.lt.s32.totalorder %s18, 1
      %s180 = scalar_select %p179, %s18, 1
      %p181 = scmp.lt.s32.totalorder %s19, 0
      %s182 = scalar_select %p181, %s19, 0
      %s183 = smul.addr %s180, 28
      %s184 = sadd.s32 %s182, %s183
      %s185 = smul.addr %s184, 8
      %s186 = scalar_lea.vmem %s0, %s185
      %p187 = pneg %p49
      %p188 = pneg %p46
      %p189 = scmp.lt.s32.totalorder %s19, 0
      %s190 = scalar_select %p189, %s19, 0
      %s191 = smul.addr %s190, 8
      %s192 = scalar_lea.vmem %s1, %s191
      %p193 = pneg %p75
      %p194 = pneg %p72
      %p195 = scmp.lt.s32.totalorder %s19, 0
      %s196 = scalar_select %p195, %s19, 0
      %s197 = scalar_lea.vmem %s2, %s196
      %p198 = pneg %p101
      %p199 = pneg %p98
      %p200 = pneg %p129
      %p201 = pneg %p126
      %p202 = scmp.lt.s32.totalorder %s18, 1
      %s203 = scalar_select %p202, %s18, 1
      %p204 = scmp.lt.s32.totalorder %s19, 0
      %s205 = scalar_select %p204, %s19, 0
      %s206 = smul.addr %s203, 8
      %s207 = sadd.s32 %s205, %s206
      %s208 = smul.addr %s207, 8
      %s209 = scalar_lea.vmem %s3, %s208
      %p210 = scmp.lt.s32.totalorder %s18, 1
      %s211 = scalar_select %p210, %s18, 1
      %p212 = scmp.lt.s32.totalorder %s19, 0
      %s213 = scalar_select %p212, %s19, 0
      %s214 = smul.addr %s211, 28
      %s215 = sadd.s32 %s213, %s214
      %s216 = smul.addr %s215, 8
      %s217 = scalar_lea.vmem %s0, %s216
      %p218 = scmp.lt.s32.totalorder %s19, 0
      %s219 = scalar_select %p218, %s19, 0
      %s220 = smul.addr %s219, 8
      %s221 = scalar_lea.vmem %s1, %s220
      %p222 = scmp.lt.s32.totalorder %s19, 0
      %s223 = scalar_select %p222, %s19, 0
      %s224 = scalar_lea.vmem %s2, %s223
      %p225 = scmp.lt.s32.totalorder %s18, 1
      %s226 = scalar_select %p225, %s18, 1
      %p227 = scmp.lt.s32.totalorder %s19, 0
      %s228 = scalar_select %p227, %s19, 0
      %s229 = smul.addr %s226, 8
      %s230 = sadd.s32 %s228, %s229
      %s231 = smul.addr %s230, 8
      %s232 = scalar_lea.vmem %s3, %s231
      %v233 = vld [vmem:[%s217] sm:$0xff]
      %v234 = vld [vmem:[%s217 + $0x8] sm:$0x3f]
      %v235 = vld [vmem:[%s217 + $0x10] sm:$0xff]
      %v236 = vld [vmem:[%s217 + $0x18] sm:$0x3f]
      %v237 = vld [vmem:[%s217 + $0x20] sm:$0xff]
      %v238 = vld [vmem:[%s217 + $0x28] sm:$0x3f]
      %v239 = vld [vmem:[%s217 + $0x30] sm:$0xff]
      %v240 = vld [vmem:[%s217 + $0x38] sm:$0x3f]
      %v241 = vld [vmem:[%s217 + $0x40] sm:$0xff]
      %v242 = vld [vmem:[%s217 + $0x48] sm:$0x3f]
      %v243 = vld [vmem:[%s217 + $0x50] sm:$0xff]
      %v244 = vld [vmem:[%s217 + $0x58] sm:$0x3f]
      %v245 = vld [vmem:[%s217 + $0x60] sm:$0xff]
      %v246 = vld [vmem:[%s217 + $0x68] sm:$0x3f]
      %v247 = vld [vmem:[%s217 + $0x70] sm:$0xff]
      %v248 = vld [vmem:[%s217 + $0x78] sm:$0x3f]
      %v249 = vld [vmem:[%s217 + $0x80] sm:$0xff]
      %v250 = vld [vmem:[%s217 + $0x88] sm:$0x3f]
      %v251 = vld [vmem:[%s217 + $0x90] sm:$0xff]
      %v252 = vld [vmem:[%s217 + $0x98] sm:$0x3f]
      %v253 = vld [vmem:[%s217 + $0xa0] sm:$0xff]
      %v254 = vld [vmem:[%s217 + $0xa8] sm:$0x3f]
      %v255 = vld [vmem:[%s217 + $0xb0] sm:$0xff]
      %v256 = vld [vmem:[%s217 + $0xb8] sm:$0x3f]
      %v257 = vld [vmem:[%s217 + $0xc0] sm:$0xff]
      %v258 = vld [vmem:[%s217 + $0xc8] sm:$0x3f]
      %v259 = vld [vmem:[%s217 + $0xd0] sm:$0xff]
      %v260 = vld [vmem:[%s217 + $0xd8] sm:$0x3f]
      %v261 = vld [vmem:[%s221] sm:$0xff]
      %v262 = vld [vmem:[%s221 + $0x8] sm:$0xff]
      %v263 = vld [vmem:[%s221 + $0x10] sm:$0xff]
      %v264 = vld [vmem:[%s221 + $0x18] sm:$0xff]
      %v265 = vld [vmem:[%s221 + $0x20] sm:$0xff]
      %v266 = vld [vmem:[%s221 + $0x28] sm:$0xff]
      %v267 = vld [vmem:[%s221 + $0x30] sm:$0x1]
      %v268 = vperm.slane %v261, 0
      %v269 = vmul.f32 %v233, %v268
      %v270 = vmul.f32 %v235, %v268
      %v271 = vmul.f32 %v237, %v268
      %v272 = vmul.f32 %v239, %v268
      %v273 = vmul.f32 %v241, %v268
      %v274 = vmul.f32 %v243, %v268
      %v275 = vmul.f32 %v245, %v268
      %v276 = vmul.f32 %v247, %v268
      %v277 = vadd.f32 %v269, 0.0
      %v278 = vadd.f32 %v270, 0.0
      %v279 = vadd.f32 %v271, 0.0
      %v280 = vadd.f32 %v272, 0.0
      %v281 = vadd.f32 %v273, 0.0
      %v282 = vadd.f32 %v274, 0.0
      %v283 = vadd.f32 %v275, 0.0
      %v284 = vadd.f32 %v276, 0.0
      %v285 = vperm.slane %v261, 1
      %v286 = vmul.f32 %v233, %v285
      %v287 = vmul.f32 %v234, %v285
      %v288 = vmul.f32 %v235, %v285
      %v289 = vmul.f32 %v236, %v285
      %v290 = vmul.f32 %v237, %v285
      %v291 = vmul.f32 %v238, %v285
      %v292 = vmul.f32 %v239, %v285
      %v293 = vmul.f32 %v240, %v285
      %v294 = vmul.f32 %v241, %v285
      %v295 = vmul.f32 %v242, %v285
      %v296 = vmul.f32 %v243, %v285
      %v297 = vmul.f32 %v244, %v285
      %v298 = vmul.f32 %v245, %v285
      %v299 = vmul.f32 %v246, %v285
      %v300 = vmul.f32 %v247, %v285
      %v301 = vmul.f32 %v248, %v285
      %vm318 = vcmask 1046528
      %v319 = vrot.slane %v286, 1
      %v320 = vrot.slane %v287, 1
      %v321 = vsel %vm318, %v319, %v320
      %v322 = vrot.slane %v288, 1
      %v323 = vrot.slane %v289, 1
      %v324 = vsel %vm318, %v322, %v323
      %v325 = vrot.slane %v290, 1
      %v326 = vrot.slane %v291, 1
      %v327 = vsel %vm318, %v325, %v326
      %v328 = vrot.slane %v292, 1
      %v329 = vrot.slane %v293, 1
      %v330 = vsel %vm318, %v328, %v329
      %v331 = vrot.slane %v294, 1
      %v332 = vrot.slane %v295, 1
      %v333 = vsel %vm318, %v331, %v332
      %v334 = vrot.slane %v296, 1
      %v335 = vrot.slane %v297, 1
      %v336 = vsel %vm318, %v334, %v335
      %v337 = vrot.slane %v298, 1
      %v338 = vrot.slane %v299, 1
      %v339 = vsel %vm318, %v337, %v338
      %v340 = vrot.slane %v300, 1
      %v341 = vrot.slane %v301, 1
      %v342 = vsel %vm318, %v340, %v341
      %v351 = vadd.f32 %v277, %v321
      %v352 = vadd.f32 %v278, %v324
      %v353 = vadd.f32 %v279, %v327
      %v354 = vadd.f32 %v280, %v330
      %v355 = vadd.f32 %v281, %v333
      %v356 = vadd.f32 %v282, %v336
      %v357 = vadd.f32 %v283, %v339
      %v358 = vadd.f32 %v284, %v342
      %v359 = vperm.slane %v261, 2
      %v360 = vmul.f32 %v233, %v359
      %v361 = vmul.f32 %v234, %v359
      %v362 = vmul.f32 %v235, %v359
      %v363 = vmul.f32 %v236, %v359
      %v364 = vmul.f32 %v237, %v359
      %v365 = vmul.f32 %v238, %v359
      %v366 = vmul.f32 %v239, %v359
      %v367 = vmul.f32 %v240, %v359
      %v368 = vmul.f32 %v241, %v359
      %v369 = vmul.f32 %v242, %v359
      %v370 = vmul.f32 %v243, %v359
      %v371 = vmul.f32 %v244, %v359
      %v372 = vmul.f32 %v245, %v359
      %v373 = vmul.f32 %v246, %v359
      %v374 = vmul.f32 %v247, %v359
      %v375 = vmul.f32 %v248, %v359
      %vm392 = vcmask 1045504
      %v393 = vrot.slane %v360, 2
      %v394 = vrot.slane %v361, 2
      %v395 = vsel %vm392, %v393, %v394
      %v396 = vrot.slane %v362, 2
      %v397 = vrot.slane %v363, 2
      %v398 = vsel %vm392, %v396, %v397
      %v399 = vrot.slane %v364, 2
      %v400 = vrot.slane %v365, 2
      %v401 = vsel %vm392, %v399, %v400
      %v402 = vrot.slane %v366, 2
      %v403 = vrot.slane %v367, 2
      %v404 = vsel %vm392, %v402, %v403
      %v405 = vrot.slane %v368, 2
      %v406 = vrot.slane %v369, 2
      %v407 = vsel %vm392, %v405, %v406
      %v408 = vrot.slane %v370, 2
      %v409 = vrot.slane %v371, 2
      %v410 = vsel %vm392, %v408, %v409
      %v411 = vrot.slane %v372, 2
      %v412 = vrot.slane %v373, 2
      %v413 = vsel %vm392, %v411, %v412
      %v414 = vrot.slane %v374, 2
      %v415 = vrot.slane %v375, 2
      %v416 = vsel %vm392, %v414, %v415
      %v425 = vadd.f32 %v351, %v395
      %v426 = vadd.f32 %v352, %v398
      %v427 = vadd.f32 %v353, %v401
      %v428 = vadd.f32 %v354, %v404
      %v429 = vadd.f32 %v355, %v407
      %v430 = vadd.f32 %v356, %v410
      %v431 = vadd.f32 %v357, %v413
      %v432 = vadd.f32 %v358, %v416
      %v433 = vperm.slane %v261, 3
      %v434 = vmul.f32 %v233, %v433
      %v435 = vmul.f32 %v234, %v433
      %v436 = vmul.f32 %v235, %v433
      %v437 = vmul.f32 %v236, %v433
      %v438 = vmul.f32 %v237, %v433
      %v439 = vmul.f32 %v238, %v433
      %v440 = vmul.f32 %v239, %v433
      %v441 = vmul.f32 %v240, %v433
      %v442 = vmul.f32 %v241, %v433
      %v443 = vmul.f32 %v242, %v433
      %v444 = vmul.f32 %v243, %v433
      %v445 = vmul.f32 %v244, %v433
      %v446 = vmul.f32 %v245, %v433
      %v447 = vmul.f32 %v246, %v433
      %v448 = vmul.f32 %v247, %v433
      %v449 = vmul.f32 %v248, %v433
      %vm466 = vcmask 1044480
      %v467 = vrot.slane %v434, 3
      %v468 = vrot.slane %v435, 3
      %v469 = vsel %vm466, %v467, %v468
      %v470 = vrot.slane %v436, 3
      %v471 = vrot.slane %v437, 3
      %v472 = vsel %vm466, %v470, %v471
      %v473 = vrot.slane %v438, 3
      %v474 = vrot.slane %v439, 3
      %v475 = vsel %vm466, %v473, %v474
      %v476 = vrot.slane %v440, 3
      %v477 = vrot.slane %v441, 3
      %v478 = vsel %vm466, %v476, %v477
      %v479 = vrot.slane %v442, 3
      %v480 = vrot.slane %v443, 3
      %v481 = vsel %vm466, %v479, %v480
      %v482 = vrot.slane %v444, 3
      %v483 = vrot.slane %v445, 3
      %v484 = vsel %vm466, %v482, %v483
      %v485 = vrot.slane %v446, 3
      %v486 = vrot.slane %v447, 3
      %v487 = vsel %vm466, %v485, %v486
      %v488 = vrot.slane %v448, 3
      %v489 = vrot.slane %v449, 3
      %v490 = vsel %vm466, %v488, %v489
      %v499 = vadd.f32 %v425, %v469
      %v500 = vadd.f32 %v426, %v472
      %v501 = vadd.f32 %v427, %v475
      %v502 = vadd.f32 %v428, %v478
      %v503 = vadd.f32 %v429, %v481
      %v504 = vadd.f32 %v430, %v484
      %v505 = vadd.f32 %v431, %v487
      %v506 = vadd.f32 %v432, %v490
      %v507 = vperm.slane %v261, 4
      %v508 = vmul.f32 %v233, %v507
      %v509 = vmul.f32 %v234, %v507
      %v510 = vmul.f32 %v235, %v507
      %v511 = vmul.f32 %v236, %v507
      %v512 = vmul.f32 %v237, %v507
      %v513 = vmul.f32 %v238, %v507
      %v514 = vmul.f32 %v239, %v507
      %v515 = vmul.f32 %v240, %v507
      %v516 = vmul.f32 %v241, %v507
      %v517 = vmul.f32 %v242, %v507
      %v518 = vmul.f32 %v243, %v507
      %v519 = vmul.f32 %v244, %v507
      %v520 = vmul.f32 %v245, %v507
      %v521 = vmul.f32 %v246, %v507
      %v522 = vmul.f32 %v247, %v507
      %v523 = vmul.f32 %v248, %v507
      %vm540 = vcmask 1043456
      %v541 = vrot.slane %v508, 4
      %v542 = vrot.slane %v509, 4
      %v543 = vsel %vm540, %v541, %v542
      %v544 = vrot.slane %v510, 4
      %v545 = vrot.slane %v511, 4
      %v546 = vsel %vm540, %v544, %v545
      %v547 = vrot.slane %v512, 4
      %v548 = vrot.slane %v513, 4
      %v549 = vsel %vm540, %v547, %v548
      %v550 = vrot.slane %v514, 4
      %v551 = vrot.slane %v515, 4
      %v552 = vsel %vm540, %v550, %v551
      %v553 = vrot.slane %v516, 4
      %v554 = vrot.slane %v517, 4
      %v555 = vsel %vm540, %v553, %v554
      %v556 = vrot.slane %v518, 4
      %v557 = vrot.slane %v519, 4
      %v558 = vsel %vm540, %v556, %v557
      %v559 = vrot.slane %v520, 4
      %v560 = vrot.slane %v521, 4
      %v561 = vsel %vm540, %v559, %v560
      %v562 = vrot.slane %v522, 4
      %v563 = vrot.slane %v523, 4
      %v564 = vsel %vm540, %v562, %v563
      %v573 = vadd.f32 %v499, %v543
      %v574 = vadd.f32 %v500, %v546
      %v575 = vadd.f32 %v501, %v549
      %v576 = vadd.f32 %v502, %v552
      %v577 = vadd.f32 %v503, %v555
      %v578 = vadd.f32 %v504, %v558
      %v579 = vadd.f32 %v505, %v561
      %v580 = vadd.f32 %v506, %v564
      %v581 = vperm.slane %v261, 5
      %v582 = vmul.f32 %v233, %v581
      %v583 = vmul.f32 %v234, %v581
      %v584 = vmul.f32 %v235, %v581
      %v585 = vmul.f32 %v236, %v581
      %v586 = vmul.f32 %v237, %v581
      %v587 = vmul.f32 %v238, %v581
      %v588 = vmul.f32 %v239, %v581
      %v589 = vmul.f32 %v240, %v581
      %v590 = vmul.f32 %v241, %v581
      %v591 = vmul.f32 %v242, %v581
      %v592 = vmul.f32 %v243, %v581
      %v593 = vmul.f32 %v244, %v581
      %v594 = vmul.f32 %v245, %v581
      %v595 = vmul.f32 %v246, %v581
      %v596 = vmul.f32 %v247, %v581
      %v597 = vmul.f32 %v248, %v581
      %vm614 = vcmask 1042432
      %v615 = vrot.slane %v582, 5
      %v616 = vrot.slane %v583, 5
      %v617 = vsel %vm614, %v615, %v616
      %v618 = vrot.slane %v584, 5
      %v619 = vrot.slane %v585, 5
      %v620 = vsel %vm614, %v618, %v619
      %v621 = vrot.slane %v586, 5
      %v622 = vrot.slane %v587, 5
      %v623 = vsel %vm614, %v621, %v622
      %v624 = vrot.slane %v588, 5
      %v625 = vrot.slane %v589, 5
      %v626 = vsel %vm614, %v624, %v625
      %v627 = vrot.slane %v590, 5
      %v628 = vrot.slane %v591, 5
      %v629 = vsel %vm614, %v627, %v628
      %v630 = vrot.slane %v592, 5
      %v631 = vrot.slane %v593, 5
      %v632 = vsel %vm614, %v630, %v631
      %v633 = vrot.slane %v594, 5
      %v634 = vrot.slane %v595, 5
      %v635 = vsel %vm614, %v633, %v634
      %v636 = vrot.slane %v596, 5
      %v637 = vrot.slane %v597, 5
      %v638 = vsel %vm614, %v636, %v637
      %v647 = vadd.f32 %v573, %v617
      %v648 = vadd.f32 %v574, %v620
      %v649 = vadd.f32 %v575, %v623
      %v650 = vadd.f32 %v576, %v626
      %v651 = vadd.f32 %v577, %v629
      %v652 = vadd.f32 %v578, %v632
      %v653 = vadd.f32 %v579, %v635
      %v654 = vadd.f32 %v580, %v638
      %v655 = vperm.slane %v261, 6
      %v656 = vmul.f32 %v233, %v655
      %v657 = vmul.f32 %v234, %v655
      %v658 = vmul.f32 %v235, %v655
      %v659 = vmul.f32 %v236, %v655
      %v660 = vmul.f32 %v237, %v655
      %v661 = vmul.f32 %v238, %v655
      %v662 = vmul.f32 %v239, %v655
      %v663 = vmul.f32 %v240, %v655
      %v664 = vmul.f32 %v241, %v655
      %v665 = vmul.f32 %v242, %v655
      %v666 = vmul.f32 %v243, %v655
      %v667 = vmul.f32 %v244, %v655
      %v668 = vmul.f32 %v245, %v655
      %v669 = vmul.f32 %v246, %v655
      %v670 = vmul.f32 %v247, %v655
      %v671 = vmul.f32 %v248, %v655
      %vm688 = vcmask 1041408
      %v689 = vrot.slane %v656, 6
      %v690 = vrot.slane %v657, 6
      %v691 = vsel %vm688, %v689, %v690
      %v692 = vrot.slane %v658, 6
      %v693 = vrot.slane %v659, 6
      %v694 = vsel %vm688, %v692, %v693
      %v695 = vrot.slane %v660, 6
      %v696 = vrot.slane %v661, 6
      %v697 = vsel %vm688, %v695, %v696
      %v698 = vrot.slane %v662, 6
      %v699 = vrot.slane %v663, 6
      %v700 = vsel %vm688, %v698, %v699
      %v701 = vrot.slane %v664, 6
      %v702 = vrot.slane %v665, 6
      %v703 = vsel %vm688, %v701, %v702
      %v704 = vrot.slane %v666, 6
      %v705 = vrot.slane %v667, 6
      %v706 = vsel %vm688, %v704, %v705
      %v707 = vrot.slane %v668, 6
      %v708 = vrot.slane %v669, 6
      %v709 = vsel %vm688, %v707, %v708
      %v710 = vrot.slane %v670, 6
      %v711 = vrot.slane %v671, 6
      %v712 = vsel %vm688, %v710, %v711
      %v721 = vadd.f32 %v647, %v691
      %v722 = vadd.f32 %v648, %v694
      %v723 = vadd.f32 %v649, %v697
      %v724 = vadd.f32 %v650, %v700
      %v725 = vadd.f32 %v651, %v703
      %v726 = vadd.f32 %v652, %v706
      %v727 = vadd.f32 %v653, %v709
      %v728 = vadd.f32 %v654, %v712
      %v729 = vperm.slane %v261, 7
      %v730 = vmul.f32 %v235, %v729
      %v731 = vmul.f32 %v237, %v729
      %v732 = vmul.f32 %v239, %v729
      %v733 = vmul.f32 %v241, %v729
      %v734 = vmul.f32 %v243, %v729
      %v735 = vmul.f32 %v245, %v729
      %v736 = vmul.f32 %v247, %v729
      %v737 = vmul.f32 %v249, %v729
      %v738 = vadd.f32 %v721, %v730
      %v739 = vadd.f32 %v722, %v731
      %v740 = vadd.f32 %v723, %v732
      %v741 = vadd.f32 %v724, %v733
      %v742 = vadd.f32 %v725, %v734
      %v743 = vadd.f32 %v726, %v735
      %v744 = vadd.f32 %v727, %v736
      %v745 = vadd.f32 %v728, %v737
      %v746 = vperm.slane %v262, 0
      %v747 = vmul.f32 %v235, %v746
      %v748 = vmul.f32 %v236, %v746
      %v749 = vmul.f32 %v237, %v746
      %v750 = vmul.f32 %v238, %v746
      %v751 = vmul.f32 %v239, %v746
      %v752 = vmul.f32 %v240, %v746
      %v753 = vmul.f32 %v241, %v746
      %v754 = vmul.f32 %v242, %v746
      %v755 = vmul.f32 %v243, %v746
      %v756 = vmul.f32 %v244, %v746
      %v757 = vmul.f32 %v245, %v746
      %v758 = vmul.f32 %v246, %v746
      %v759 = vmul.f32 %v247, %v746
      %v760 = vmul.f32 %v248, %v746
      %v761 = vmul.f32 %v249, %v746
      %v762 = vmul.f32 %v250, %v746
      %v779 = vrot.slane %v747, 1
      %v780 = vrot.slane %v748, 1
      %v781 = vsel %vm318, %v779, %v780
      %v782 = vrot.slane %v749, 1
      %v783 = vrot.slane %v750, 1
      %v784 = vsel %vm318, %v782, %v783
      %v785 = vrot.slane %v751, 1
      %v786 = vrot.slane %v752, 1
      %v787 = vsel %vm318, %v785, %v786
      %v788 = vrot.slane %v753, 1
      %v789 = vrot.slane %v754, 1
      %v790 = vsel %vm318, %v788, %v789
      %v791 = vrot.slane %v755, 1
      %v792 = vrot.slane %v756, 1
      %v793 = vsel %vm318, %v791, %v792
      %v794 = vrot.slane %v757, 1
      %v795 = vrot.slane %v758, 1
      %v796 = vsel %vm318, %v794, %v795
      %v797 = vrot.slane %v759, 1
      %v798 = vrot.slane %v760, 1
      %v799 = vsel %vm318, %v797, %v798
      %v800 = vrot.slane %v761, 1
      %v801 = vrot.slane %v762, 1
      %v802 = vsel %vm318, %v800, %v801
      %v811 = vadd.f32 %v738, %v781
      %v812 = vadd.f32 %v739, %v784
      %v813 = vadd.f32 %v740, %v787
      %v814 = vadd.f32 %v741, %v790
      %v815 = vadd.f32 %v742, %v793
      %v816 = vadd.f32 %v743, %v796
      %v817 = vadd.f32 %v744, %v799
      %v818 = vadd.f32 %v745, %v802
      %v819 = vperm.slane %v262, 1
      %v820 = vmul.f32 %v235, %v819
      %v821 = vmul.f32 %v236, %v819
      %v822 = vmul.f32 %v237, %v819
      %v823 = vmul.f32 %v238, %v819
      %v824 = vmul.f32 %v239, %v819
      %v825 = vmul.f32 %v240, %v819
      %v826 = vmul.f32 %v241, %v819
      %v827 = vmul.f32 %v242, %v819
      %v828 = vmul.f32 %v243, %v819
      %v829 = vmul.f32 %v244, %v819
      %v830 = vmul.f32 %v245, %v819
      %v831 = vmul.f32 %v246, %v819
      %v832 = vmul.f32 %v247, %v819
      %v833 = vmul.f32 %v248, %v819
      %v834 = vmul.f32 %v249, %v819
      %v835 = vmul.f32 %v250, %v819
      %v852 = vrot.slane %v820, 2
      %v853 = vrot.slane %v821, 2
      %v854 = vsel %vm392, %v852, %v853
      %v855 = vrot.slane %v822, 2
      %v856 = vrot.slane %v823, 2
      %v857 = vsel %vm392, %v855, %v856
      %v858 = vrot.slane %v824, 2
      %v859 = vrot.slane %v825, 2
      %v860 = vsel %vm392, %v858, %v859
      %v861 = vrot.slane %v826, 2
      %v862 = vrot.slane %v827, 2
      %v863 = vsel %vm392, %v861, %v862
      %v864 = vrot.slane %v828, 2
      %v865 = vrot.slane %v829, 2
      %v866 = vsel %vm392, %v864, %v865
      %v867 = vrot.slane %v830, 2
      %v868 = vrot.slane %v831, 2
      %v869 = vsel %vm392, %v867, %v868
      %v870 = vrot.slane %v832, 2
      %v871 = vrot.slane %v833, 2
      %v872 = vsel %vm392, %v870, %v871
      %v873 = vrot.slane %v834, 2
      %v874 = vrot.slane %v835, 2
      %v875 = vsel %vm392, %v873, %v874
      %v884 = vadd.f32 %v811, %v854
      %v885 = vadd.f32 %v812, %v857
      %v886 = vadd.f32 %v813, %v860
      %v887 = vadd.f32 %v814, %v863
      %v888 = vadd.f32 %v815, %v866
      %v889 = vadd.f32 %v816, %v869
      %v890 = vadd.f32 %v817, %v872
      %v891 = vadd.f32 %v818, %v875
      %v892 = vperm.slane %v262, 2
      %v893 = vmul.f32 %v235, %v892
      %v894 = vmul.f32 %v236, %v892
      %v895 = vmul.f32 %v237, %v892
      %v896 = vmul.f32 %v238, %v892
      %v897 = vmul.f32 %v239, %v892
      %v898 = vmul.f32 %v240, %v892
      %v899 = vmul.f32 %v241, %v892
      %v900 = vmul.f32 %v242, %v892
      %v901 = vmul.f32 %v243, %v892
      %v902 = vmul.f32 %v244, %v892
      %v903 = vmul.f32 %v245, %v892
      %v904 = vmul.f32 %v246, %v892
      %v905 = vmul.f32 %v247, %v892
      %v906 = vmul.f32 %v248, %v892
      %v907 = vmul.f32 %v249, %v892
      %v908 = vmul.f32 %v250, %v892
      %v925 = vrot.slane %v893, 3
      %v926 = vrot.slane %v894, 3
      %v927 = vsel %vm466, %v925, %v926
      %v928 = vrot.slane %v895, 3
      %v929 = vrot.slane %v896, 3
      %v930 = vsel %vm466, %v928, %v929
      %v931 = vrot.slane %v897, 3
      %v932 = vrot.slane %v898, 3
      %v933 = vsel %vm466, %v931, %v932
      %v934 = vrot.slane %v899, 3
      %v935 = vrot.slane %v900, 3
      %v936 = vsel %vm466, %v934, %v935
      %v937 = vrot.slane %v901, 3
      %v938 = vrot.slane %v902, 3
      %v939 = vsel %vm466, %v937, %v938
      %v940 = vrot.slane %v903, 3
      %v941 = vrot.slane %v904, 3
      %v942 = vsel %vm466, %v940, %v941
      %v943 = vrot.slane %v905, 3
      %v944 = vrot.slane %v906, 3
      %v945 = vsel %vm466, %v943, %v944
      %v946 = vrot.slane %v907, 3
      %v947 = vrot.slane %v908, 3
      %v948 = vsel %vm466, %v946, %v947
      %v957 = vadd.f32 %v884, %v927
      %v958 = vadd.f32 %v885, %v930
      %v959 = vadd.f32 %v886, %v933
      %v960 = vadd.f32 %v887, %v936
      %v961 = vadd.f32 %v888, %v939
      %v962 = vadd.f32 %v889, %v942
      %v963 = vadd.f32 %v890, %v945
      %v964 = vadd.f32 %v891, %v948
      %v965 = vperm.slane %v262, 3
      %v966 = vmul.f32 %v235, %v965
      %v967 = vmul.f32 %v236, %v965
      %v968 = vmul.f32 %v237, %v965
      %v969 = vmul.f32 %v238, %v965
      %v970 = vmul.f32 %v239, %v965
      %v971 = vmul.f32 %v240, %v965
      %v972 = vmul.f32 %v241, %v965
      %v973 = vmul.f32 %v242, %v965
      %v974 = vmul.f32 %v243, %v965
      %v975 = vmul.f32 %v244, %v965
      %v976 = vmul.f32 %v245, %v965
      %v977 = vmul.f32 %v246, %v965
      %v978 = vmul.f32 %v247, %v965
      %v979 = vmul.f32 %v248, %v965
      %v980 = vmul.f32 %v249, %v965
      %v981 = vmul.f32 %v250, %v965
      %v998 = vrot.slane %v966, 4
      %v999 = vrot.slane %v967, 4
      %v1000 = vsel %vm540, %v998, %v999
      %v1001 = vrot.slane %v968, 4
      %v1002 = vrot.slane %v969, 4
      %v1003 = vsel %vm540, %v1001, %v1002
      %v1004 = vrot.slane %v970, 4
      %v1005 = vrot.slane %v971, 4
      %v1006 = vsel %vm540, %v1004, %v1005
      %v1007 = vrot.slane %v972, 4
      %v1008 = vrot.slane %v973, 4
      %v1009 = vsel %vm540, %v1007, %v1008
      %v1010 = vrot.slane %v974, 4
      %v1011 = vrot.slane %v975, 4
      %v1012 = vsel %vm540, %v1010, %v1011
      %v1013 = vrot.slane %v976, 4
      %v1014 = vrot.slane %v977, 4
      %v1015 = vsel %vm540, %v1013, %v1014
      %v1016 = vrot.slane %v978, 4
      %v1017 = vrot.slane %v979, 4
      %v1018 = vsel %vm540, %v1016, %v1017
      %v1019 = vrot.slane %v980, 4
      %v1020 = vrot.slane %v981, 4
      %v1021 = vsel %vm540, %v1019, %v1020
      %v1030 = vadd.f32 %v957, %v1000
      %v1031 = vadd.f32 %v958, %v1003
      %v1032 = vadd.f32 %v959, %v1006
      %v1033 = vadd.f32 %v960, %v1009
      %v1034 = vadd.f32 %v961, %v1012
      %v1035 = vadd.f32 %v962, %v1015
      %v1036 = vadd.f32 %v963, %v1018
      %v1037 = vadd.f32 %v964, %v1021
      %v1038 = vperm.slane %v262, 4
      %v1039 = vmul.f32 %v235, %v1038
      %v1040 = vmul.f32 %v236, %v1038
      %v1041 = vmul.f32 %v237, %v1038
      %v1042 = vmul.f32 %v238, %v1038
      %v1043 = vmul.f32 %v239, %v1038
      %v1044 = vmul.f32 %v240, %v1038
      %v1045 = vmul.f32 %v241, %v1038
      %v1046 = vmul.f32 %v242, %v1038
      %v1047 = vmul.f32 %v243, %v1038
      %v1048 = vmul.f32 %v244, %v1038
      %v1049 = vmul.f32 %v245, %v1038
      %v1050 = vmul.f32 %v246, %v1038
      %v1051 = vmul.f32 %v247, %v1038
      %v1052 = vmul.f32 %v248, %v1038
      %v1053 = vmul.f32 %v249, %v1038
      %v1054 = vmul.f32 %v250, %v1038
      %v1071 = vrot.slane %v1039, 5
      %v1072 = vrot.slane %v1040, 5
      %v1073 = vsel %vm614, %v1071, %v1072
      %v1074 = vrot.slane %v1041, 5
      %v1075 = vrot.slane %v1042, 5
      %v1076 = vsel %vm614, %v1074, %v1075
      %v1077 = vrot.slane %v1043, 5
      %v1078 = vrot.slane %v1044, 5
      %v1079 = vsel %vm614, %v1077, %v1078
      %v1080 = vrot.slane %v1045, 5
      %v1081 = vrot.slane %v1046, 5
      %v1082 = vsel %vm614, %v1080, %v1081
      %v1083 = vrot.slane %v1047, 5
      %v1084 = vrot.slane %v1048, 5
      %v1085 = vsel %vm614, %v1083, %v1084
      %v1086 = vrot.slane %v1049, 5
      %v1087 = vrot.slane %v1050, 5
      %v1088 = vsel %vm614, %v1086, %v1087
      %v1089 = vrot.slane %v1051, 5
      %v1090 = vrot.slane %v1052, 5
      %v1091 = vsel %vm614, %v1089, %v1090
      %v1092 = vrot.slane %v1053, 5
      %v1093 = vrot.slane %v1054, 5
      %v1094 = vsel %vm614, %v1092, %v1093
      %v1103 = vadd.f32 %v1030, %v1073
      %v1104 = vadd.f32 %v1031, %v1076
      %v1105 = vadd.f32 %v1032, %v1079
      %v1106 = vadd.f32 %v1033, %v1082
      %v1107 = vadd.f32 %v1034, %v1085
      %v1108 = vadd.f32 %v1035, %v1088
      %v1109 = vadd.f32 %v1036, %v1091
      %v1110 = vadd.f32 %v1037, %v1094
      %v1111 = vperm.slane %v262, 5
      %v1112 = vmul.f32 %v235, %v1111
      %v1113 = vmul.f32 %v236, %v1111
      %v1114 = vmul.f32 %v237, %v1111
      %v1115 = vmul.f32 %v238, %v1111
      %v1116 = vmul.f32 %v239, %v1111
      %v1117 = vmul.f32 %v240, %v1111
      %v1118 = vmul.f32 %v241, %v1111
      %v1119 = vmul.f32 %v242, %v1111
      %v1120 = vmul.f32 %v243, %v1111
      %v1121 = vmul.f32 %v244, %v1111
      %v1122 = vmul.f32 %v245, %v1111
      %v1123 = vmul.f32 %v246, %v1111
      %v1124 = vmul.f32 %v247, %v1111
      %v1125 = vmul.f32 %v248, %v1111
      %v1126 = vmul.f32 %v249, %v1111
      %v1127 = vmul.f32 %v250, %v1111
      %v1144 = vrot.slane %v1112, 6
      %v1145 = vrot.slane %v1113, 6
      %v1146 = vsel %vm688, %v1144, %v1145
      %v1147 = vrot.slane %v1114, 6
      %v1148 = vrot.slane %v1115, 6
      %v1149 = vsel %vm688, %v1147, %v1148
      %v1150 = vrot.slane %v1116, 6
      %v1151 = vrot.slane %v1117, 6
      %v1152 = vsel %vm688, %v1150, %v1151
      %v1153 = vrot.slane %v1118, 6
      %v1154 = vrot.slane %v1119, 6
      %v1155 = vsel %vm688, %v1153, %v1154
      %v1156 = vrot.slane %v1120, 6
      %v1157 = vrot.slane %v1121, 6
      %v1158 = vsel %vm688, %v1156, %v1157
      %v1159 = vrot.slane %v1122, 6
      %v1160 = vrot.slane %v1123, 6
      %v1161 = vsel %vm688, %v1159, %v1160
      %v1162 = vrot.slane %v1124, 6
      %v1163 = vrot.slane %v1125, 6
      %v1164 = vsel %vm688, %v1162, %v1163
      %v1165 = vrot.slane %v1126, 6
      %v1166 = vrot.slane %v1127, 6
      %v1167 = vsel %vm688, %v1165, %v1166
      %v1176 = vadd.f32 %v1103, %v1146
      %v1177 = vadd.f32 %v1104, %v1149
      %v1178 = vadd.f32 %v1105, %v1152
      %v1179 = vadd.f32 %v1106, %v1155
      %v1180 = vadd.f32 %v1107, %v1158
      %v1181 = vadd.f32 %v1108, %v1161
      %v1182 = vadd.f32 %v1109, %v1164
      %v1183 = vadd.f32 %v1110, %v1167
      %v1184 = vperm.slane %v262, 6
      %v1185 = vmul.f32 %v237, %v1184
      %v1186 = vmul.f32 %v239, %v1184
      %v1187 = vmul.f32 %v241, %v1184
      %v1188 = vmul.f32 %v243, %v1184
      %v1189 = vmul.f32 %v245, %v1184
      %v1190 = vmul.f32 %v247, %v1184
      %v1191 = vmul.f32 %v249, %v1184
      %v1192 = vmul.f32 %v251, %v1184
      %v1193 = vadd.f32 %v1176, %v1185
      %v1194 = vadd.f32 %v1177, %v1186
      %v1195 = vadd.f32 %v1178, %v1187
      %v1196 = vadd.f32 %v1179, %v1188
      %v1197 = vadd.f32 %v1180, %v1189
      %v1198 = vadd.f32 %v1181, %v1190
      %v1199 = vadd.f32 %v1182, %v1191
      %v1200 = vadd.f32 %v1183, %v1192
      %v1201 = vperm.slane %v262, 7
      %v1202 = vmul.f32 %v237, %v1201
      %v1203 = vmul.f32 %v238, %v1201
      %v1204 = vmul.f32 %v239, %v1201
      %v1205 = vmul.f32 %v240, %v1201
      %v1206 = vmul.f32 %v241, %v1201
      %v1207 = vmul.f32 %v242, %v1201
      %v1208 = vmul.f32 %v243, %v1201
      %v1209 = vmul.f32 %v244, %v1201
      %v1210 = vmul.f32 %v245, %v1201
      %v1211 = vmul.f32 %v246, %v1201
      %v1212 = vmul.f32 %v247, %v1201
      %v1213 = vmul.f32 %v248, %v1201
      %v1214 = vmul.f32 %v249, %v1201
      %v1215 = vmul.f32 %v250, %v1201
      %v1216 = vmul.f32 %v251, %v1201
      %v1217 = vmul.f32 %v252, %v1201
      %v1234 = vrot.slane %v1202, 1
      %v1235 = vrot.slane %v1203, 1
      %v1236 = vsel %vm318, %v1234, %v1235
      %v1237 = vrot.slane %v1204, 1
      %v1238 = vrot.slane %v1205, 1
      %v1239 = vsel %vm318, %v1237, %v1238
      %v1240 = vrot.slane %v1206, 1
      %v1241 = vrot.slane %v1207, 1
      %v1242 = vsel %vm318, %v1240, %v1241
      %v1243 = vrot.slane %v1208, 1
      %v1244 = vrot.slane %v1209, 1
      %v1245 = vsel %vm318, %v1243, %v1244
      %v1246 = vrot.slane %v1210, 1
      %v1247 = vrot.slane %v1211, 1
      %v1248 = vsel %vm318, %v1246, %v1247
      %v1249 = vrot.slane %v1212, 1
      %v1250 = vrot.slane %v1213, 1
      %v1251 = vsel %vm318, %v1249, %v1250
      %v1252 = vrot.slane %v1214, 1
      %v1253 = vrot.slane %v1215, 1
      %v1254 = vsel %vm318, %v1252, %v1253
      %v1255 = vrot.slane %v1216, 1
      %v1256 = vrot.slane %v1217, 1
      %v1257 = vsel %vm318, %v1255, %v1256
      %v1266 = vadd.f32 %v1193, %v1236
      %v1267 = vadd.f32 %v1194, %v1239
      %v1268 = vadd.f32 %v1195, %v1242
      %v1269 = vadd.f32 %v1196, %v1245
      %v1270 = vadd.f32 %v1197, %v1248
      %v1271 = vadd.f32 %v1198, %v1251
      %v1272 = vadd.f32 %v1199, %v1254
      %v1273 = vadd.f32 %v1200, %v1257
      %v1274 = vperm.slane %v263, 0
      %v1275 = vmul.f32 %v237, %v1274
      %v1276 = vmul.f32 %v238, %v1274
      %v1277 = vmul.f32 %v239, %v1274
      %v1278 = vmul.f32 %v240, %v1274
      %v1279 = vmul.f32 %v241, %v1274
      %v1280 = vmul.f32 %v242, %v1274
      %v1281 = vmul.f32 %v243, %v1274
      %v1282 = vmul.f32 %v244, %v1274
      %v1283 = vmul.f32 %v245, %v1274
      %v1284 = vmul.f32 %v246, %v1274
      %v1285 = vmul.f32 %v247, %v1274
      %v1286 = vmul.f32 %v248, %v1274
      %v1287 = vmul.f32 %v249, %v1274
      %v1288 = vmul.f32 %v250, %v1274
      %v1289 = vmul.f32 %v251, %v1274
      %v1290 = vmul.f32 %v252, %v1274
      %v1307 = vrot.slane %v1275, 2
      %v1308 = vrot.slane %v1276, 2
      %v1309 = vsel %vm392, %v1307, %v1308
      %v1310 = vrot.slane %v1277, 2
      %v1311 = vrot.slane %v1278, 2
      %v1312 = vsel %vm392, %v1310, %v1311
      %v1313 = vrot.slane %v1279, 2
      %v1314 = vrot.slane %v1280, 2
      %v1315 = vsel %vm392, %v1313, %v1314
      %v1316 = vrot.slane %v1281, 2
      %v1317 = vrot.slane %v1282, 2
      %v1318 = vsel %vm392, %v1316, %v1317
      %v1319 = vrot.slane %v1283, 2
      %v1320 = vrot.slane %v1284, 2
      %v1321 = vsel %vm392, %v1319, %v1320
      %v1322 = vrot.slane %v1285, 2
      %v1323 = vrot.slane %v1286, 2
      %v1324 = vsel %vm392, %v1322, %v1323
      %v1325 = vrot.slane %v1287, 2
      %v1326 = vrot.slane %v1288, 2
      %v1327 = vsel %vm392, %v1325, %v1326
      %v1328 = vrot.slane %v1289, 2
      %v1329 = vrot.slane %v1290, 2
      %v1330 = vsel %vm392, %v1328, %v1329
      %v1339 = vadd.f32 %v1266, %v1309
      %v1340 = vadd.f32 %v1267, %v1312
      %v1341 = vadd.f32 %v1268, %v1315
      %v1342 = vadd.f32 %v1269, %v1318
      %v1343 = vadd.f32 %v1270, %v1321
      %v1344 = vadd.f32 %v1271, %v1324
      %v1345 = vadd.f32 %v1272, %v1327
      %v1346 = vadd.f32 %v1273, %v1330
      %v1347 = vperm.slane %v263, 1
      %v1348 = vmul.f32 %v237, %v1347
      %v1349 = vmul.f32 %v238, %v1347
      %v1350 = vmul.f32 %v239, %v1347
      %v1351 = vmul.f32 %v240, %v1347
      %v1352 = vmul.f32 %v241, %v1347
      %v1353 = vmul.f32 %v242, %v1347
      %v1354 = vmul.f32 %v243, %v1347
      %v1355 = vmul.f32 %v244, %v1347
      %v1356 = vmul.f32 %v245, %v1347
      %v1357 = vmul.f32 %v246, %v1347
      %v1358 = vmul.f32 %v247, %v1347
      %v1359 = vmul.f32 %v248, %v1347
      %v1360 = vmul.f32 %v249, %v1347
      %v1361 = vmul.f32 %v250, %v1347
      %v1362 = vmul.f32 %v251, %v1347
      %v1363 = vmul.f32 %v252, %v1347
      %v1380 = vrot.slane %v1348, 3
      %v1381 = vrot.slane %v1349, 3
      %v1382 = vsel %vm466, %v1380, %v1381
      %v1383 = vrot.slane %v1350, 3
      %v1384 = vrot.slane %v1351, 3
      %v1385 = vsel %vm466, %v1383, %v1384
      %v1386 = vrot.slane %v1352, 3
      %v1387 = vrot.slane %v1353, 3
      %v1388 = vsel %vm466, %v1386, %v1387
      %v1389 = vrot.slane %v1354, 3
      %v1390 = vrot.slane %v1355, 3
      %v1391 = vsel %vm466, %v1389, %v1390
      %v1392 = vrot.slane %v1356, 3
      %v1393 = vrot.slane %v1357, 3
      %v1394 = vsel %vm466, %v1392, %v1393
      %v1395 = vrot.slane %v1358, 3
      %v1396 = vrot.slane %v1359, 3
      %v1397 = vsel %vm466, %v1395, %v1396
      %v1398 = vrot.slane %v1360, 3
      %v1399 = vrot.slane %v1361, 3
      %v1400 = vsel %vm466, %v1398, %v1399
      %v1401 = vrot.slane %v1362, 3
      %v1402 = vrot.slane %v1363, 3
      %v1403 = vsel %vm466, %v1401, %v1402
      %v1412 = vadd.f32 %v1339, %v1382
      %v1413 = vadd.f32 %v1340, %v1385
      %v1414 = vadd.f32 %v1341, %v1388
      %v1415 = vadd.f32 %v1342, %v1391
      %v1416 = vadd.f32 %v1343, %v1394
      %v1417 = vadd.f32 %v1344, %v1397
      %v1418 = vadd.f32 %v1345, %v1400
      %v1419 = vadd.f32 %v1346, %v1403
      %v1420 = vperm.slane %v263, 2
      %v1421 = vmul.f32 %v237, %v1420
      %v1422 = vmul.f32 %v238, %v1420
      %v1423 = vmul.f32 %v239, %v1420
      %v1424 = vmul.f32 %v240, %v1420
      %v1425 = vmul.f32 %v241, %v1420
      %v1426 = vmul.f32 %v242, %v1420
      %v1427 = vmul.f32 %v243, %v1420
      %v1428 = vmul.f32 %v244, %v1420
      %v1429 = vmul.f32 %v245, %v1420
      %v1430 = vmul.f32 %v246, %v1420
      %v1431 = vmul.f32 %v247, %v1420
      %v1432 = vmul.f32 %v248, %v1420
      %v1433 = vmul.f32 %v249, %v1420
      %v1434 = vmul.f32 %v250, %v1420
      %v1435 = vmul.f32 %v251, %v1420
      %v1436 = vmul.f32 %v252, %v1420
      %v1453 = vrot.slane %v1421, 4
      %v1454 = vrot.slane %v1422, 4
      %v1455 = vsel %vm540, %v1453, %v1454
      %v1456 = vrot.slane %v1423, 4
      %v1457 = vrot.slane %v1424, 4
      %v1458 = vsel %vm540, %v1456, %v1457
      %v1459 = vrot.slane %v1425, 4
      %v1460 = vrot.slane %v1426, 4
      %v1461 = vsel %vm540, %v1459, %v1460
      %v1462 = vrot.slane %v1427, 4
      %v1463 = vrot.slane %v1428, 4
      %v1464 = vsel %vm540, %v1462, %v1463
      %v1465 = vrot.slane %v1429, 4
      %v1466 = vrot.slane %v1430, 4
      %v1467 = vsel %vm540, %v1465, %v1466
      %v1468 = vrot.slane %v1431, 4
      %v1469 = vrot.slane %v1432, 4
      %v1470 = vsel %vm540, %v1468, %v1469
      %v1471 = vrot.slane %v1433, 4
      %v1472 = vrot.slane %v1434, 4
      %v1473 = vsel %vm540, %v1471, %v1472
      %v1474 = vrot.slane %v1435, 4
      %v1475 = vrot.slane %v1436, 4
      %v1476 = vsel %vm540, %v1474, %v1475
      %v1485 = vadd.f32 %v1412, %v1455
      %v1486 = vadd.f32 %v1413, %v1458
      %v1487 = vadd.f32 %v1414, %v1461
      %v1488 = vadd.f32 %v1415, %v1464
      %v1489 = vadd.f32 %v1416, %v1467
      %v1490 = vadd.f32 %v1417, %v1470
      %v1491 = vadd.f32 %v1418, %v1473
      %v1492 = vadd.f32 %v1419, %v1476
      %v1493 = vperm.slane %v263, 3
      %v1494 = vmul.f32 %v237, %v1493
      %v1495 = vmul.f32 %v238, %v1493
      %v1496 = vmul.f32 %v239, %v1493
      %v1497 = vmul.f32 %v240, %v1493
      %v1498 = vmul.f32 %v241, %v1493
      %v1499 = vmul.f32 %v242, %v1493
      %v1500 = vmul.f32 %v243, %v1493
      %v1501 = vmul.f32 %v244, %v1493
      %v1502 = vmul.f32 %v245, %v1493
      %v1503 = vmul.f32 %v246, %v1493
      %v1504 = vmul.f32 %v247, %v1493
      %v1505 = vmul.f32 %v248, %v1493
      %v1506 = vmul.f32 %v249, %v1493
      %v1507 = vmul.f32 %v250, %v1493
      %v1508 = vmul.f32 %v251, %v1493
      %v1509 = vmul.f32 %v252, %v1493
      %v1526 = vrot.slane %v1494, 5
      %v1527 = vrot.slane %v1495, 5
      %v1528 = vsel %vm614, %v1526, %v1527
      %v1529 = vrot.slane %v1496, 5
      %v1530 = vrot.slane %v1497, 5
      %v1531 = vsel %vm614, %v1529, %v1530
      %v1532 = vrot.slane %v1498, 5
      %v1533 = vrot.slane %v1499, 5
      %v1534 = vsel %vm614, %v1532, %v1533
      %v1535 = vrot.slane %v1500, 5
      %v1536 = vrot.slane %v1501, 5
      %v1537 = vsel %vm614, %v1535, %v1536
      %v1538 = vrot.slane %v1502, 5
      %v1539 = vrot.slane %v1503, 5
      %v1540 = vsel %vm614, %v1538, %v1539
      %v1541 = vrot.slane %v1504, 5
      %v1542 = vrot.slane %v1505, 5
      %v1543 = vsel %vm614, %v1541, %v1542
      %v1544 = vrot.slane %v1506, 5
      %v1545 = vrot.slane %v1507, 5
      %v1546 = vsel %vm614, %v1544, %v1545
      %v1547 = vrot.slane %v1508, 5
      %v1548 = vrot.slane %v1509, 5
      %v1549 = vsel %vm614, %v1547, %v1548
      %v1558 = vadd.f32 %v1485, %v1528
      %v1559 = vadd.f32 %v1486, %v1531
      %v1560 = vadd.f32 %v1487, %v1534
      %v1561 = vadd.f32 %v1488, %v1537
      %v1562 = vadd.f32 %v1489, %v1540
      %v1563 = vadd.f32 %v1490, %v1543
      %v1564 = vadd.f32 %v1491, %v1546
      %v1565 = vadd.f32 %v1492, %v1549
      %v1566 = vperm.slane %v263, 4
      %v1567 = vmul.f32 %v237, %v1566
      %v1568 = vmul.f32 %v238, %v1566
      %v1569 = vmul.f32 %v239, %v1566
      %v1570 = vmul.f32 %v240, %v1566
      %v1571 = vmul.f32 %v241, %v1566
      %v1572 = vmul.f32 %v242, %v1566
      %v1573 = vmul.f32 %v243, %v1566
      %v1574 = vmul.f32 %v244, %v1566
      %v1575 = vmul.f32 %v245, %v1566
      %v1576 = vmul.f32 %v246, %v1566
      %v1577 = vmul.f32 %v247, %v1566
      %v1578 = vmul.f32 %v248, %v1566
      %v1579 = vmul.f32 %v249, %v1566
      %v1580 = vmul.f32 %v250, %v1566
      %v1581 = vmul.f32 %v251, %v1566
      %v1582 = vmul.f32 %v252, %v1566
      %v1599 = vrot.slane %v1567, 6
      %v1600 = vrot.slane %v1568, 6
      %v1601 = vsel %vm688, %v1599, %v1600
      %v1602 = vrot.slane %v1569, 6
      %v1603 = vrot.slane %v1570, 6
      %v1604 = vsel %vm688, %v1602, %v1603
      %v1605 = vrot.slane %v1571, 6
      %v1606 = vrot.slane %v1572, 6
      %v1607 = vsel %vm688, %v1605, %v1606
      %v1608 = vrot.slane %v1573, 6
      %v1609 = vrot.slane %v1574, 6
      %v1610 = vsel %vm688, %v1608, %v1609
      %v1611 = vrot.slane %v1575, 6
      %v1612 = vrot.slane %v1576, 6
      %v1613 = vsel %vm688, %v1611, %v1612
      %v1614 = vrot.slane %v1577, 6
      %v1615 = vrot.slane %v1578, 6
      %v1616 = vsel %vm688, %v1614, %v1615
      %v1617 = vrot.slane %v1579, 6
      %v1618 = vrot.slane %v1580, 6
      %v1619 = vsel %vm688, %v1617, %v1618
      %v1620 = vrot.slane %v1581, 6
      %v1621 = vrot.slane %v1582, 6
      %v1622 = vsel %vm688, %v1620, %v1621
      %v1631 = vadd.f32 %v1558, %v1601
      %v1632 = vadd.f32 %v1559, %v1604
      %v1633 = vadd.f32 %v1560, %v1607
      %v1634 = vadd.f32 %v1561, %v1610
      %v1635 = vadd.f32 %v1562, %v1613
      %v1636 = vadd.f32 %v1563, %v1616
      %v1637 = vadd.f32 %v1564, %v1619
      %v1638 = vadd.f32 %v1565, %v1622
      %v1639 = vperm.slane %v263, 5
      %v1640 = vmul.f32 %v239, %v1639
      %v1641 = vmul.f32 %v241, %v1639
      %v1642 = vmul.f32 %v243, %v1639
      %v1643 = vmul.f32 %v245, %v1639
      %v1644 = vmul.f32 %v247, %v1639
      %v1645 = vmul.f32 %v249, %v1639
      %v1646 = vmul.f32 %v251, %v1639
      %v1647 = vmul.f32 %v253, %v1639
      %v1648 = vadd.f32 %v1631, %v1640
      %v1649 = vadd.f32 %v1632, %v1641
      %v1650 = vadd.f32 %v1633, %v1642
      %v1651 = vadd.f32 %v1634, %v1643
      %v1652 = vadd.f32 %v1635, %v1644
      %v1653 = vadd.f32 %v1636, %v1645
      %v1654 = vadd.f32 %v1637, %v1646
      %v1655 = vadd.f32 %v1638, %v1647
      %v1656 = vperm.slane %v263, 6
      %v1657 = vmul.f32 %v239, %v1656
      %v1658 = vmul.f32 %v240, %v1656
      %v1659 = vmul.f32 %v241, %v1656
      %v1660 = vmul.f32 %v242, %v1656
      %v1661 = vmul.f32 %v243, %v1656
      %v1662 = vmul.f32 %v244, %v1656
      %v1663 = vmul.f32 %v245, %v1656
      %v1664 = vmul.f32 %v246, %v1656
      %v1665 = vmul.f32 %v247, %v1656
      %v1666 = vmul.f32 %v248, %v1656
      %v1667 = vmul.f32 %v249, %v1656
      %v1668 = vmul.f32 %v250, %v1656
      %v1669 = vmul.f32 %v251, %v1656
      %v1670 = vmul.f32 %v252, %v1656
      %v1671 = vmul.f32 %v253, %v1656
      %v1672 = vmul.f32 %v254, %v1656
      %v1689 = vrot.slane %v1657, 1
      %v1690 = vrot.slane %v1658, 1
      %v1691 = vsel %vm318, %v1689, %v1690
      %v1692 = vrot.slane %v1659, 1
      %v1693 = vrot.slane %v1660, 1
      %v1694 = vsel %vm318, %v1692, %v1693
      %v1695 = vrot.slane %v1661, 1
      %v1696 = vrot.slane %v1662, 1
      %v1697 = vsel %vm318, %v1695, %v1696
      %v1698 = vrot.slane %v1663, 1
      %v1699 = vrot.slane %v1664, 1
      %v1700 = vsel %vm318, %v1698, %v1699
      %v1701 = vrot.slane %v1665, 1
      %v1702 = vrot.slane %v1666, 1
      %v1703 = vsel %vm318, %v1701, %v1702
      %v1704 = vrot.slane %v1667, 1
      %v1705 = vrot.slane %v1668, 1
      %v1706 = vsel %vm318, %v1704, %v1705
      %v1707 = vrot.slane %v1669, 1
      %v1708 = vrot.slane %v1670, 1
      %v1709 = vsel %vm318, %v1707, %v1708
      %v1710 = vrot.slane %v1671, 1
      %v1711 = vrot.slane %v1672, 1
      %v1712 = vsel %vm318, %v1710, %v1711
      %v1721 = vadd.f32 %v1648, %v1691
      %v1722 = vadd.f32 %v1649, %v1694
      %v1723 = vadd.f32 %v1650, %v1697
      %v1724 = vadd.f32 %v1651, %v1700
      %v1725 = vadd.f32 %v1652, %v1703
      %v1726 = vadd.f32 %v1653, %v1706
      %v1727 = vadd.f32 %v1654, %v1709
      %v1728 = vadd.f32 %v1655, %v1712
      %v1729 = vperm.slane %v263, 7
      %v1730 = vmul.f32 %v239, %v1729
      %v1731 = vmul.f32 %v240, %v1729
      %v1732 = vmul.f32 %v241, %v1729
      %v1733 = vmul.f32 %v242, %v1729
      %v1734 = vmul.f32 %v243, %v1729
      %v1735 = vmul.f32 %v244, %v1729
      %v1736 = vmul.f32 %v245, %v1729
      %v1737 = vmul.f32 %v246, %v1729
      %v1738 = vmul.f32 %v247, %v1729
      %v1739 = vmul.f32 %v248, %v1729
      %v1740 = vmul.f32 %v249, %v1729
      %v1741 = vmul.f32 %v250, %v1729
      %v1742 = vmul.f32 %v251, %v1729
      %v1743 = vmul.f32 %v252, %v1729
      %v1744 = vmul.f32 %v253, %v1729
      %v1745 = vmul.f32 %v254, %v1729
      %v1762 = vrot.slane %v1730, 2
      %v1763 = vrot.slane %v1731, 2
      %v1764 = vsel %vm392, %v1762, %v1763
      %v1765 = vrot.slane %v1732, 2
      %v1766 = vrot.slane %v1733, 2
      %v1767 = vsel %vm392, %v1765, %v1766
      %v1768 = vrot.slane %v1734, 2
      %v1769 = vrot.slane %v1735, 2
      %v1770 = vsel %vm392, %v1768, %v1769
      %v1771 = vrot.slane %v1736, 2
      %v1772 = vrot.slane %v1737, 2
      %v1773 = vsel %vm392, %v1771, %v1772
      %v1774 = vrot.slane %v1738, 2
      %v1775 = vrot.slane %v1739, 2
      %v1776 = vsel %vm392, %v1774, %v1775
      %v1777 = vrot.slane %v1740, 2
      %v1778 = vrot.slane %v1741, 2
      %v1779 = vsel %vm392, %v1777, %v1778
      %v1780 = vrot.slane %v1742, 2
      %v1781 = vrot.slane %v1743, 2
      %v1782 = vsel %vm392, %v1780, %v1781
      %v1783 = vrot.slane %v1744, 2
      %v1784 = vrot.slane %v1745, 2
      %v1785 = vsel %vm392, %v1783, %v1784
      %v1794 = vadd.f32 %v1721, %v1764
      %v1795 = vadd.f32 %v1722, %v1767
      %v1796 = vadd.f32 %v1723, %v1770
      %v1797 = vadd.f32 %v1724, %v1773
      %v1798 = vadd.f32 %v1725, %v1776
      %v1799 = vadd.f32 %v1726, %v1779
      %v1800 = vadd.f32 %v1727, %v1782
      %v1801 = vadd.f32 %v1728, %v1785
      %v1802 = vperm.slane %v264, 0
      %v1803 = vmul.f32 %v239, %v1802
      %v1804 = vmul.f32 %v240, %v1802
      %v1805 = vmul.f32 %v241, %v1802
      %v1806 = vmul.f32 %v242, %v1802
      %v1807 = vmul.f32 %v243, %v1802
      %v1808 = vmul.f32 %v244, %v1802
      %v1809 = vmul.f32 %v245, %v1802
      %v1810 = vmul.f32 %v246, %v1802
      %v1811 = vmul.f32 %v247, %v1802
      %v1812 = vmul.f32 %v248, %v1802
      %v1813 = vmul.f32 %v249, %v1802
      %v1814 = vmul.f32 %v250, %v1802
      %v1815 = vmul.f32 %v251, %v1802
      %v1816 = vmul.f32 %v252, %v1802
      %v1817 = vmul.f32 %v253, %v1802
      %v1818 = vmul.f32 %v254, %v1802
      %v1835 = vrot.slane %v1803, 3
      %v1836 = vrot.slane %v1804, 3
      %v1837 = vsel %vm466, %v1835, %v1836
      %v1838 = vrot.slane %v1805, 3
      %v1839 = vrot.slane %v1806, 3
      %v1840 = vsel %vm466, %v1838, %v1839
      %v1841 = vrot.slane %v1807, 3
      %v1842 = vrot.slane %v1808, 3
      %v1843 = vsel %vm466, %v1841, %v1842
      %v1844 = vrot.slane %v1809, 3
      %v1845 = vrot.slane %v1810, 3
      %v1846 = vsel %vm466, %v1844, %v1845
      %v1847 = vrot.slane %v1811, 3
      %v1848 = vrot.slane %v1812, 3
      %v1849 = vsel %vm466, %v1847, %v1848
      %v1850 = vrot.slane %v1813, 3
      %v1851 = vrot.slane %v1814, 3
      %v1852 = vsel %vm466, %v1850, %v1851
      %v1853 = vrot.slane %v1815, 3
      %v1854 = vrot.slane %v1816, 3
      %v1855 = vsel %vm466, %v1853, %v1854
      %v1856 = vrot.slane %v1817, 3
      %v1857 = vrot.slane %v1818, 3
      %v1858 = vsel %vm466, %v1856, %v1857
      %v1867 = vadd.f32 %v1794, %v1837
      %v1868 = vadd.f32 %v1795, %v1840
      %v1869 = vadd.f32 %v1796, %v1843
      %v1870 = vadd.f32 %v1797, %v1846
      %v1871 = vadd.f32 %v1798, %v1849
      %v1872 = vadd.f32 %v1799, %v1852
      %v1873 = vadd.f32 %v1800, %v1855
      %v1874 = vadd.f32 %v1801, %v1858
      %v1875 = vperm.slane %v264, 1
      %v1876 = vmul.f32 %v239, %v1875
      %v1877 = vmul.f32 %v240, %v1875
      %v1878 = vmul.f32 %v241, %v1875
      %v1879 = vmul.f32 %v242, %v1875
      %v1880 = vmul.f32 %v243, %v1875
      %v1881 = vmul.f32 %v244, %v1875
      %v1882 = vmul.f32 %v245, %v1875
      %v1883 = vmul.f32 %v246, %v1875
      %v1884 = vmul.f32 %v247, %v1875
      %v1885 = vmul.f32 %v248, %v1875
      %v1886 = vmul.f32 %v249, %v1875
      %v1887 = vmul.f32 %v250, %v1875
      %v1888 = vmul.f32 %v251, %v1875
      %v1889 = vmul.f32 %v252, %v1875
      %v1890 = vmul.f32 %v253, %v1875
      %v1891 = vmul.f32 %v254, %v1875
      %v1908 = vrot.slane %v1876, 4
      %v1909 = vrot.slane %v1877, 4
      %v1910 = vsel %vm540, %v1908, %v1909
      %v1911 = vrot.slane %v1878, 4
      %v1912 = vrot.slane %v1879, 4
      %v1913 = vsel %vm540, %v1911, %v1912
      %v1914 = vrot.slane %v1880, 4
      %v1915 = vrot.slane %v1881, 4
      %v1916 = vsel %vm540, %v1914, %v1915
      %v1917 = vrot.slane %v1882, 4
      %v1918 = vrot.slane %v1883, 4
      %v1919 = vsel %vm540, %v1917, %v1918
      %v1920 = vrot.slane %v1884, 4
      %v1921 = vrot.slane %v1885, 4
      %v1922 = vsel %vm540, %v1920, %v1921
      %v1923 = vrot.slane %v1886, 4
      %v1924 = vrot.slane %v1887, 4
      %v1925 = vsel %vm540, %v1923, %v1924
      %v1926 = vrot.slane %v1888, 4
      %v1927 = vrot.slane %v1889, 4
      %v1928 = vsel %vm540, %v1926, %v1927
      %v1929 = vrot.slane %v1890, 4
      %v1930 = vrot.slane %v1891, 4
      %v1931 = vsel %vm540, %v1929, %v1930
      %v1940 = vadd.f32 %v1867, %v1910
      %v1941 = vadd.f32 %v1868, %v1913
      %v1942 = vadd.f32 %v1869, %v1916
      %v1943 = vadd.f32 %v1870, %v1919
      %v1944 = vadd.f32 %v1871, %v1922
      %v1945 = vadd.f32 %v1872, %v1925
      %v1946 = vadd.f32 %v1873, %v1928
      %v1947 = vadd.f32 %v1874, %v1931
      %v1948 = vperm.slane %v264, 2
      %v1949 = vmul.f32 %v239, %v1948
      %v1950 = vmul.f32 %v240, %v1948
      %v1951 = vmul.f32 %v241, %v1948
      %v1952 = vmul.f32 %v242, %v1948
      %v1953 = vmul.f32 %v243, %v1948
      %v1954 = vmul.f32 %v244, %v1948
      %v1955 = vmul.f32 %v245, %v1948
      %v1956 = vmul.f32 %v246, %v1948
      %v1957 = vmul.f32 %v247, %v1948
      %v1958 = vmul.f32 %v248, %v1948
      %v1959 = vmul.f32 %v249, %v1948
      %v1960 = vmul.f32 %v250, %v1948
      %v1961 = vmul.f32 %v251, %v1948
      %v1962 = vmul.f32 %v252, %v1948
      %v1963 = vmul.f32 %v253, %v1948
      %v1964 = vmul.f32 %v254, %v1948
      %v1981 = vrot.slane %v1949, 5
      %v1982 = vrot.slane %v1950, 5
      %v1983 = vsel %vm614, %v1981, %v1982
      %v1984 = vrot.slane %v1951, 5
      %v1985 = vrot.slane %v1952, 5
      %v1986 = vsel %vm614, %v1984, %v1985
      %v1987 = vrot.slane %v1953, 5
      %v1988 = vrot.slane %v1954, 5
      %v1989 = vsel %vm614, %v1987, %v1988
      %v1990 = vrot.slane %v1955, 5
      %v1991 = vrot.slane %v1956, 5
      %v1992 = vsel %vm614, %v1990, %v1991
      %v1993 = vrot.slane %v1957, 5
      %v1994 = vrot.slane %v1958, 5
      %v1995 = vsel %vm614, %v1993, %v1994
      %v1996 = vrot.slane %v1959, 5
      %v1997 = vrot.slane %v1960, 5
      %v1998 = vsel %vm614, %v1996, %v1997
      %v1999 = vrot.slane %v1961, 5
      %v2000 = vrot.slane %v1962, 5
      %v2001 = vsel %vm614, %v1999, %v2000
      %v2002 = vrot.slane %v1963, 5
      %v2003 = vrot.slane %v1964, 5
      %v2004 = vsel %vm614, %v2002, %v2003
      %v2013 = vadd.f32 %v1940, %v1983
      %v2014 = vadd.f32 %v1941, %v1986
      %v2015 = vadd.f32 %v1942, %v1989
      %v2016 = vadd.f32 %v1943, %v1992
      %v2017 = vadd.f32 %v1944, %v1995
      %v2018 = vadd.f32 %v1945, %v1998
      %v2019 = vadd.f32 %v1946, %v2001
      %v2020 = vadd.f32 %v1947, %v2004
      %v2021 = vperm.slane %v264, 3
      %v2022 = vmul.f32 %v239, %v2021
      %v2023 = vmul.f32 %v240, %v2021
      %v2024 = vmul.f32 %v241, %v2021
      %v2025 = vmul.f32 %v242, %v2021
      %v2026 = vmul.f32 %v243, %v2021
      %v2027 = vmul.f32 %v244, %v2021
      %v2028 = vmul.f32 %v245, %v2021
      %v2029 = vmul.f32 %v246, %v2021
      %v2030 = vmul.f32 %v247, %v2021
      %v2031 = vmul.f32 %v248, %v2021
      %v2032 = vmul.f32 %v249, %v2021
      %v2033 = vmul.f32 %v250, %v2021
      %v2034 = vmul.f32 %v251, %v2021
      %v2035 = vmul.f32 %v252, %v2021
      %v2036 = vmul.f32 %v253, %v2021
      %v2037 = vmul.f32 %v254, %v2021
      %v2054 = vrot.slane %v2022, 6
      %v2055 = vrot.slane %v2023, 6
      %v2056 = vsel %vm688, %v2054, %v2055
      %v2057 = vrot.slane %v2024, 6
      %v2058 = vrot.slane %v2025, 6
      %v2059 = vsel %vm688, %v2057, %v2058
      %v2060 = vrot.slane %v2026, 6
      %v2061 = vrot.slane %v2027, 6
      %v2062 = vsel %vm688, %v2060, %v2061
      %v2063 = vrot.slane %v2028, 6
      %v2064 = vrot.slane %v2029, 6
      %v2065 = vsel %vm688, %v2063, %v2064
      %v2066 = vrot.slane %v2030, 6
      %v2067 = vrot.slane %v2031, 6
      %v2068 = vsel %vm688, %v2066, %v2067
      %v2069 = vrot.slane %v2032, 6
      %v2070 = vrot.slane %v2033, 6
      %v2071 = vsel %vm688, %v2069, %v2070
      %v2072 = vrot.slane %v2034, 6
      %v2073 = vrot.slane %v2035, 6
      %v2074 = vsel %vm688, %v2072, %v2073
      %v2075 = vrot.slane %v2036, 6
      %v2076 = vrot.slane %v2037, 6
      %v2077 = vsel %vm688, %v2075, %v2076
      %v2086 = vadd.f32 %v2013, %v2056
      %v2087 = vadd.f32 %v2014, %v2059
      %v2088 = vadd.f32 %v2015, %v2062
      %v2089 = vadd.f32 %v2016, %v2065
      %v2090 = vadd.f32 %v2017, %v2068
      %v2091 = vadd.f32 %v2018, %v2071
      %v2092 = vadd.f32 %v2019, %v2074
      %v2093 = vadd.f32 %v2020, %v2077
      %v2094 = vperm.slane %v264, 4
      %v2095 = vmul.f32 %v241, %v2094
      %v2096 = vmul.f32 %v243, %v2094
      %v2097 = vmul.f32 %v245, %v2094
      %v2098 = vmul.f32 %v247, %v2094
      %v2099 = vmul.f32 %v249, %v2094
      %v2100 = vmul.f32 %v251, %v2094
      %v2101 = vmul.f32 %v253, %v2094
      %v2102 = vmul.f32 %v255, %v2094
      %v2103 = vadd.f32 %v2086, %v2095
      %v2104 = vadd.f32 %v2087, %v2096
      %v2105 = vadd.f32 %v2088, %v2097
      %v2106 = vadd.f32 %v2089, %v2098
      %v2107 = vadd.f32 %v2090, %v2099
      %v2108 = vadd.f32 %v2091, %v2100
      %v2109 = vadd.f32 %v2092, %v2101
      %v2110 = vadd.f32 %v2093, %v2102
      %v2111 = vperm.slane %v264, 5
      %v2112 = vmul.f32 %v241, %v2111
      %v2113 = vmul.f32 %v242, %v2111
      %v2114 = vmul.f32 %v243, %v2111
      %v2115 = vmul.f32 %v244, %v2111
      %v2116 = vmul.f32 %v245, %v2111
      %v2117 = vmul.f32 %v246, %v2111
      %v2118 = vmul.f32 %v247, %v2111
      %v2119 = vmul.f32 %v248, %v2111
      %v2120 = vmul.f32 %v249, %v2111
      %v2121 = vmul.f32 %v250, %v2111
      %v2122 = vmul.f32 %v251, %v2111
      %v2123 = vmul.f32 %v252, %v2111
      %v2124 = vmul.f32 %v253, %v2111
      %v2125 = vmul.f32 %v254, %v2111
      %v2126 = vmul.f32 %v255, %v2111
      %v2127 = vmul.f32 %v256, %v2111
      %v2144 = vrot.slane %v2112, 1
      %v2145 = vrot.slane %v2113, 1
      %v2146 = vsel %vm318, %v2144, %v2145
      %v2147 = vrot.slane %v2114, 1
      %v2148 = vrot.slane %v2115, 1
      %v2149 = vsel %vm318, %v2147, %v2148
      %v2150 = vrot.slane %v2116, 1
      %v2151 = vrot.slane %v2117, 1
      %v2152 = vsel %vm318, %v2150, %v2151
      %v2153 = vrot.slane %v2118, 1
      %v2154 = vrot.slane %v2119, 1
      %v2155 = vsel %vm318, %v2153, %v2154
      %v2156 = vrot.slane %v2120, 1
      %v2157 = vrot.slane %v2121, 1
      %v2158 = vsel %vm318, %v2156, %v2157
      %v2159 = vrot.slane %v2122, 1
      %v2160 = vrot.slane %v2123, 1
      %v2161 = vsel %vm318, %v2159, %v2160
      %v2162 = vrot.slane %v2124, 1
      %v2163 = vrot.slane %v2125, 1
      %v2164 = vsel %vm318, %v2162, %v2163
      %v2165 = vrot.slane %v2126, 1
      %v2166 = vrot.slane %v2127, 1
      %v2167 = vsel %vm318, %v2165, %v2166
      %v2176 = vadd.f32 %v2103, %v2146
      %v2177 = vadd.f32 %v2104, %v2149
      %v2178 = vadd.f32 %v2105, %v2152
      %v2179 = vadd.f32 %v2106, %v2155
      %v2180 = vadd.f32 %v2107, %v2158
      %v2181 = vadd.f32 %v2108, %v2161
      %v2182 = vadd.f32 %v2109, %v2164
      %v2183 = vadd.f32 %v2110, %v2167
      %v2184 = vperm.slane %v264, 6
      %v2185 = vmul.f32 %v241, %v2184
      %v2186 = vmul.f32 %v242, %v2184
      %v2187 = vmul.f32 %v243, %v2184
      %v2188 = vmul.f32 %v244, %v2184
      %v2189 = vmul.f32 %v245, %v2184
      %v2190 = vmul.f32 %v246, %v2184
      %v2191 = vmul.f32 %v247, %v2184
      %v2192 = vmul.f32 %v248, %v2184
      %v2193 = vmul.f32 %v249, %v2184
      %v2194 = vmul.f32 %v250, %v2184
      %v2195 = vmul.f32 %v251, %v2184
      %v2196 = vmul.f32 %v252, %v2184
      %v2197 = vmul.f32 %v253, %v2184
      %v2198 = vmul.f32 %v254, %v2184
      %v2199 = vmul.f32 %v255, %v2184
      %v2200 = vmul.f32 %v256, %v2184
      %v2217 = vrot.slane %v2185, 2
      %v2218 = vrot.slane %v2186, 2
      %v2219 = vsel %vm392, %v2217, %v2218
      %v2220 = vrot.slane %v2187, 2
      %v2221 = vrot.slane %v2188, 2
      %v2222 = vsel %vm392, %v2220, %v2221
      %v2223 = vrot.slane %v2189, 2
      %v2224 = vrot.slane %v2190, 2
      %v2225 = vsel %vm392, %v2223, %v2224
      %v2226 = vrot.slane %v2191, 2
      %v2227 = vrot.slane %v2192, 2
      %v2228 = vsel %vm392, %v2226, %v2227
      %v2229 = vrot.slane %v2193, 2
      %v2230 = vrot.slane %v2194, 2
      %v2231 = vsel %vm392, %v2229, %v2230
      %v2232 = vrot.slane %v2195, 2
      %v2233 = vrot.slane %v2196, 2
      %v2234 = vsel %vm392, %v2232, %v2233
      %v2235 = vrot.slane %v2197, 2
      %v2236 = vrot.slane %v2198, 2
      %v2237 = vsel %vm392, %v2235, %v2236
      %v2238 = vrot.slane %v2199, 2
      %v2239 = vrot.slane %v2200, 2
      %v2240 = vsel %vm392, %v2238, %v2239
      %v2249 = vadd.f32 %v2176, %v2219
      %v2250 = vadd.f32 %v2177, %v2222
      %v2251 = vadd.f32 %v2178, %v2225
      %v2252 = vadd.f32 %v2179, %v2228
      %v2253 = vadd.f32 %v2180, %v2231
      %v2254 = vadd.f32 %v2181, %v2234
      %v2255 = vadd.f32 %v2182, %v2237
      %v2256 = vadd.f32 %v2183, %v2240
      %v2257 = vperm.slane %v264, 7
      %v2258 = vmul.f32 %v241, %v2257
      %v2259 = vmul.f32 %v242, %v2257
      %v2260 = vmul.f32 %v243, %v2257
      %v2261 = vmul.f32 %v244, %v2257
      %v2262 = vmul.f32 %v245, %v2257
      %v2263 = vmul.f32 %v246, %v2257
      %v2264 = vmul.f32 %v247, %v2257
      %v2265 = vmul.f32 %v248, %v2257
      %v2266 = vmul.f32 %v249, %v2257
      %v2267 = vmul.f32 %v250, %v2257
      %v2268 = vmul.f32 %v251, %v2257
      %v2269 = vmul.f32 %v252, %v2257
      %v2270 = vmul.f32 %v253, %v2257
      %v2271 = vmul.f32 %v254, %v2257
      %v2272 = vmul.f32 %v255, %v2257
      %v2273 = vmul.f32 %v256, %v2257
      %v2290 = vrot.slane %v2258, 3
      %v2291 = vrot.slane %v2259, 3
      %v2292 = vsel %vm466, %v2290, %v2291
      %v2293 = vrot.slane %v2260, 3
      %v2294 = vrot.slane %v2261, 3
      %v2295 = vsel %vm466, %v2293, %v2294
      %v2296 = vrot.slane %v2262, 3
      %v2297 = vrot.slane %v2263, 3
      %v2298 = vsel %vm466, %v2296, %v2297
      %v2299 = vrot.slane %v2264, 3
      %v2300 = vrot.slane %v2265, 3
      %v2301 = vsel %vm466, %v2299, %v2300
      %v2302 = vrot.slane %v2266, 3
      %v2303 = vrot.slane %v2267, 3
      %v2304 = vsel %vm466, %v2302, %v2303
      %v2305 = vrot.slane %v2268, 3
      %v2306 = vrot.slane %v2269, 3
      %v2307 = vsel %vm466, %v2305, %v2306
      %v2308 = vrot.slane %v2270, 3
      %v2309 = vrot.slane %v2271, 3
      %v2310 = vsel %vm466, %v2308, %v2309
      %v2311 = vrot.slane %v2272, 3
      %v2312 = vrot.slane %v2273, 3
      %v2313 = vsel %vm466, %v2311, %v2312
      %v2322 = vadd.f32 %v2249, %v2292
      %v2323 = vadd.f32 %v2250, %v2295
      %v2324 = vadd.f32 %v2251, %v2298
      %v2325 = vadd.f32 %v2252, %v2301
      %v2326 = vadd.f32 %v2253, %v2304
      %v2327 = vadd.f32 %v2254, %v2307
      %v2328 = vadd.f32 %v2255, %v2310
      %v2329 = vadd.f32 %v2256, %v2313
      %v2330 = vperm.slane %v265, 0
      %v2331 = vmul.f32 %v241, %v2330
      %v2332 = vmul.f32 %v242, %v2330
      %v2333 = vmul.f32 %v243, %v2330
      %v2334 = vmul.f32 %v244, %v2330
      %v2335 = vmul.f32 %v245, %v2330
      %v2336 = vmul.f32 %v246, %v2330
      %v2337 = vmul.f32 %v247, %v2330
      %v2338 = vmul.f32 %v248, %v2330
      %v2339 = vmul.f32 %v249, %v2330
      %v2340 = vmul.f32 %v250, %v2330
      %v2341 = vmul.f32 %v251, %v2330
      %v2342 = vmul.f32 %v252, %v2330
      %v2343 = vmul.f32 %v253, %v2330
      %v2344 = vmul.f32 %v254, %v2330
      %v2345 = vmul.f32 %v255, %v2330
      %v2346 = vmul.f32 %v256, %v2330
      %v2363 = vrot.slane %v2331, 4
      %v2364 = vrot.slane %v2332, 4
      %v2365 = vsel %vm540, %v2363, %v2364
      %v2366 = vrot.slane %v2333, 4
      %v2367 = vrot.slane %v2334, 4
      %v2368 = vsel %vm540, %v2366, %v2367
      %v2369 = vrot.slane %v2335, 4
      %v2370 = vrot.slane %v2336, 4
      %v2371 = vsel %vm540, %v2369, %v2370
      %v2372 = vrot.slane %v2337, 4
      %v2373 = vrot.slane %v2338, 4
      %v2374 = vsel %vm540, %v2372, %v2373
      %v2375 = vrot.slane %v2339, 4
      %v2376 = vrot.slane %v2340, 4
      %v2377 = vsel %vm540, %v2375, %v2376
      %v2378 = vrot.slane %v2341, 4
      %v2379 = vrot.slane %v2342, 4
      %v2380 = vsel %vm540, %v2378, %v2379
      %v2381 = vrot.slane %v2343, 4
      %v2382 = vrot.slane %v2344, 4
      %v2383 = vsel %vm540, %v2381, %v2382
      %v2384 = vrot.slane %v2345, 4
      %v2385 = vrot.slane %v2346, 4
      %v2386 = vsel %vm540, %v2384, %v2385
      %v2395 = vadd.f32 %v2322, %v2365
      %v2396 = vadd.f32 %v2323, %v2368
      %v2397 = vadd.f32 %v2324, %v2371
      %v2398 = vadd.f32 %v2325, %v2374
      %v2399 = vadd.f32 %v2326, %v2377
      %v2400 = vadd.f32 %v2327, %v2380
      %v2401 = vadd.f32 %v2328, %v2383
      %v2402 = vadd.f32 %v2329, %v2386
      %v2403 = vperm.slane %v265, 1
      %v2404 = vmul.f32 %v241, %v2403
      %v2405 = vmul.f32 %v242, %v2403
      %v2406 = vmul.f32 %v243, %v2403
      %v2407 = vmul.f32 %v244, %v2403
      %v2408 = vmul.f32 %v245, %v2403
      %v2409 = vmul.f32 %v246, %v2403
      %v2410 = vmul.f32 %v247, %v2403
      %v2411 = vmul.f32 %v248, %v2403
      %v2412 = vmul.f32 %v249, %v2403
      %v2413 = vmul.f32 %v250, %v2403
      %v2414 = vmul.f32 %v251, %v2403
      %v2415 = vmul.f32 %v252, %v2403
      %v2416 = vmul.f32 %v253, %v2403
      %v2417 = vmul.f32 %v254, %v2403
      %v2418 = vmul.f32 %v255, %v2403
      %v2419 = vmul.f32 %v256, %v2403
      %v2436 = vrot.slane %v2404, 5
      %v2437 = vrot.slane %v2405, 5
      %v2438 = vsel %vm614, %v2436, %v2437
      %v2439 = vrot.slane %v2406, 5
      %v2440 = vrot.slane %v2407, 5
      %v2441 = vsel %vm614, %v2439, %v2440
      %v2442 = vrot.slane %v2408, 5
      %v2443 = vrot.slane %v2409, 5
      %v2444 = vsel %vm614, %v2442, %v2443
      %v2445 = vrot.slane %v2410, 5
      %v2446 = vrot.slane %v2411, 5
      %v2447 = vsel %vm614, %v2445, %v2446
      %v2448 = vrot.slane %v2412, 5
      %v2449 = vrot.slane %v2413, 5
      %v2450 = vsel %vm614, %v2448, %v2449
      %v2451 = vrot.slane %v2414, 5
      %v2452 = vrot.slane %v2415, 5
      %v2453 = vsel %vm614, %v2451, %v2452
      %v2454 = vrot.slane %v2416, 5
      %v2455 = vrot.slane %v2417, 5
      %v2456 = vsel %vm614, %v2454, %v2455
      %v2457 = vrot.slane %v2418, 5
      %v2458 = vrot.slane %v2419, 5
      %v2459 = vsel %vm614, %v2457, %v2458
      %v2468 = vadd.f32 %v2395, %v2438
      %v2469 = vadd.f32 %v2396, %v2441
      %v2470 = vadd.f32 %v2397, %v2444
      %v2471 = vadd.f32 %v2398, %v2447
      %v2472 = vadd.f32 %v2399, %v2450
      %v2473 = vadd.f32 %v2400, %v2453
      %v2474 = vadd.f32 %v2401, %v2456
      %v2475 = vadd.f32 %v2402, %v2459
      %v2476 = vperm.slane %v265, 2
      %v2477 = vmul.f32 %v241, %v2476
      %v2478 = vmul.f32 %v242, %v2476
      %v2479 = vmul.f32 %v243, %v2476
      %v2480 = vmul.f32 %v244, %v2476
      %v2481 = vmul.f32 %v245, %v2476
      %v2482 = vmul.f32 %v246, %v2476
      %v2483 = vmul.f32 %v247, %v2476
      %v2484 = vmul.f32 %v248, %v2476
      %v2485 = vmul.f32 %v249, %v2476
      %v2486 = vmul.f32 %v250, %v2476
      %v2487 = vmul.f32 %v251, %v2476
      %v2488 = vmul.f32 %v252, %v2476
      %v2489 = vmul.f32 %v253, %v2476
      %v2490 = vmul.f32 %v254, %v2476
      %v2491 = vmul.f32 %v255, %v2476
      %v2492 = vmul.f32 %v256, %v2476
      %v2509 = vrot.slane %v2477, 6
      %v2510 = vrot.slane %v2478, 6
      %v2511 = vsel %vm688, %v2509, %v2510
      %v2512 = vrot.slane %v2479, 6
      %v2513 = vrot.slane %v2480, 6
      %v2514 = vsel %vm688, %v2512, %v2513
      %v2515 = vrot.slane %v2481, 6
      %v2516 = vrot.slane %v2482, 6
      %v2517 = vsel %vm688, %v2515, %v2516
      %v2518 = vrot.slane %v2483, 6
      %v2519 = vrot.slane %v2484, 6
      %v2520 = vsel %vm688, %v2518, %v2519
      %v2521 = vrot.slane %v2485, 6
      %v2522 = vrot.slane %v2486, 6
      %v2523 = vsel %vm688, %v2521, %v2522
      %v2524 = vrot.slane %v2487, 6
      %v2525 = vrot.slane %v2488, 6
      %v2526 = vsel %vm688, %v2524, %v2525
      %v2527 = vrot.slane %v2489, 6
      %v2528 = vrot.slane %v2490, 6
      %v2529 = vsel %vm688, %v2527, %v2528
      %v2530 = vrot.slane %v2491, 6
      %v2531 = vrot.slane %v2492, 6
      %v2532 = vsel %vm688, %v2530, %v2531
      %v2541 = vadd.f32 %v2468, %v2511
      %v2542 = vadd.f32 %v2469, %v2514
      %v2543 = vadd.f32 %v2470, %v2517
      %v2544 = vadd.f32 %v2471, %v2520
      %v2545 = vadd.f32 %v2472, %v2523
      %v2546 = vadd.f32 %v2473, %v2526
      %v2547 = vadd.f32 %v2474, %v2529
      %v2548 = vadd.f32 %v2475, %v2532
      %v2549 = vperm.slane %v265, 3
      %v2550 = vmul.f32 %v243, %v2549
      %v2551 = vmul.f32 %v245, %v2549
      %v2552 = vmul.f32 %v247, %v2549
      %v2553 = vmul.f32 %v249, %v2549
      %v2554 = vmul.f32 %v251, %v2549
      %v2555 = vmul.f32 %v253, %v2549
      %v2556 = vmul.f32 %v255, %v2549
      %v2557 = vmul.f32 %v257, %v2549
      %v2558 = vadd.f32 %v2541, %v2550
      %v2559 = vadd.f32 %v2542, %v2551
      %v2560 = vadd.f32 %v2543, %v2552
      %v2561 = vadd.f32 %v2544, %v2553
      %v2562 = vadd.f32 %v2545, %v2554
      %v2563 = vadd.f32 %v2546, %v2555
      %v2564 = vadd.f32 %v2547, %v2556
      %v2565 = vadd.f32 %v2548, %v2557
      %v2566 = vperm.slane %v265, 4
      %v2567 = vmul.f32 %v243, %v2566
      %v2568 = vmul.f32 %v244, %v2566
      %v2569 = vmul.f32 %v245, %v2566
      %v2570 = vmul.f32 %v246, %v2566
      %v2571 = vmul.f32 %v247, %v2566
      %v2572 = vmul.f32 %v248, %v2566
      %v2573 = vmul.f32 %v249, %v2566
      %v2574 = vmul.f32 %v250, %v2566
      %v2575 = vmul.f32 %v251, %v2566
      %v2576 = vmul.f32 %v252, %v2566
      %v2577 = vmul.f32 %v253, %v2566
      %v2578 = vmul.f32 %v254, %v2566
      %v2579 = vmul.f32 %v255, %v2566
      %v2580 = vmul.f32 %v256, %v2566
      %v2581 = vmul.f32 %v257, %v2566
      %v2582 = vmul.f32 %v258, %v2566
      %v2599 = vrot.slane %v2567, 1
      %v2600 = vrot.slane %v2568, 1
      %v2601 = vsel %vm318, %v2599, %v2600
      %v2602 = vrot.slane %v2569, 1
      %v2603 = vrot.slane %v2570, 1
      %v2604 = vsel %vm318, %v2602, %v2603
      %v2605 = vrot.slane %v2571, 1
      %v2606 = vrot.slane %v2572, 1
      %v2607 = vsel %vm318, %v2605, %v2606
      %v2608 = vrot.slane %v2573, 1
      %v2609 = vrot.slane %v2574, 1
      %v2610 = vsel %vm318, %v2608, %v2609
      %v2611 = vrot.slane %v2575, 1
      %v2612 = vrot.slane %v2576, 1
      %v2613 = vsel %vm318, %v2611, %v2612
      %v2614 = vrot.slane %v2577, 1
      %v2615 = vrot.slane %v2578, 1
      %v2616 = vsel %vm318, %v2614, %v2615
      %v2617 = vrot.slane %v2579, 1
      %v2618 = vrot.slane %v2580, 1
      %v2619 = vsel %vm318, %v2617, %v2618
      %v2620 = vrot.slane %v2581, 1
      %v2621 = vrot.slane %v2582, 1
      %v2622 = vsel %vm318, %v2620, %v2621
      %v2631 = vadd.f32 %v2558, %v2601
      %v2632 = vadd.f32 %v2559, %v2604
      %v2633 = vadd.f32 %v2560, %v2607
      %v2634 = vadd.f32 %v2561, %v2610
      %v2635 = vadd.f32 %v2562, %v2613
      %v2636 = vadd.f32 %v2563, %v2616
      %v2637 = vadd.f32 %v2564, %v2619
      %v2638 = vadd.f32 %v2565, %v2622
      %v2639 = vperm.slane %v265, 5
      %v2640 = vmul.f32 %v243, %v2639
      %v2641 = vmul.f32 %v244, %v2639
      %v2642 = vmul.f32 %v245, %v2639
      %v2643 = vmul.f32 %v246, %v2639
      %v2644 = vmul.f32 %v247, %v2639
      %v2645 = vmul.f32 %v248, %v2639
      %v2646 = vmul.f32 %v249, %v2639
      %v2647 = vmul.f32 %v250, %v2639
      %v2648 = vmul.f32 %v251, %v2639
      %v2649 = vmul.f32 %v252, %v2639
      %v2650 = vmul.f32 %v253, %v2639
      %v2651 = vmul.f32 %v254, %v2639
      %v2652 = vmul.f32 %v255, %v2639
      %v2653 = vmul.f32 %v256, %v2639
      %v2654 = vmul.f32 %v257, %v2639
      %v2655 = vmul.f32 %v258, %v2639
      %v2672 = vrot.slane %v2640, 2
      %v2673 = vrot.slane %v2641, 2
      %v2674 = vsel %vm392, %v2672, %v2673
      %v2675 = vrot.slane %v2642, 2
      %v2676 = vrot.slane %v2643, 2
      %v2677 = vsel %vm392, %v2675, %v2676
      %v2678 = vrot.slane %v2644, 2
      %v2679 = vrot.slane %v2645, 2
      %v2680 = vsel %vm392, %v2678, %v2679
      %v2681 = vrot.slane %v2646, 2
      %v2682 = vrot.slane %v2647, 2
      %v2683 = vsel %vm392, %v2681, %v2682
      %v2684 = vrot.slane %v2648, 2
      %v2685 = vrot.slane %v2649, 2
      %v2686 = vsel %vm392, %v2684, %v2685
      %v2687 = vrot.slane %v2650, 2
      %v2688 = vrot.slane %v2651, 2
      %v2689 = vsel %vm392, %v2687, %v2688
      %v2690 = vrot.slane %v2652, 2
      %v2691 = vrot.slane %v2653, 2
      %v2692 = vsel %vm392, %v2690, %v2691
      %v2693 = vrot.slane %v2654, 2
      %v2694 = vrot.slane %v2655, 2
      %v2695 = vsel %vm392, %v2693, %v2694
      %v2704 = vadd.f32 %v2631, %v2674
      %v2705 = vadd.f32 %v2632, %v2677
      %v2706 = vadd.f32 %v2633, %v2680
      %v2707 = vadd.f32 %v2634, %v2683
      %v2708 = vadd.f32 %v2635, %v2686
      %v2709 = vadd.f32 %v2636, %v2689
      %v2710 = vadd.f32 %v2637, %v2692
      %v2711 = vadd.f32 %v2638, %v2695
      %v2712 = vperm.slane %v265, 6
      %v2713 = vmul.f32 %v243, %v2712
      %v2714 = vmul.f32 %v244, %v2712
      %v2715 = vmul.f32 %v245, %v2712
      %v2716 = vmul.f32 %v246, %v2712
      %v2717 = vmul.f32 %v247, %v2712
      %v2718 = vmul.f32 %v248, %v2712
      %v2719 = vmul.f32 %v249, %v2712
      %v2720 = vmul.f32 %v250, %v2712
      %v2721 = vmul.f32 %v251, %v2712
      %v2722 = vmul.f32 %v252, %v2712
      %v2723 = vmul.f32 %v253, %v2712
      %v2724 = vmul.f32 %v254, %v2712
      %v2725 = vmul.f32 %v255, %v2712
      %v2726 = vmul.f32 %v256, %v2712
      %v2727 = vmul.f32 %v257, %v2712
      %v2728 = vmul.f32 %v258, %v2712
      %v2745 = vrot.slane %v2713, 3
      %v2746 = vrot.slane %v2714, 3
      %v2747 = vsel %vm466, %v2745, %v2746
      %v2748 = vrot.slane %v2715, 3
      %v2749 = vrot.slane %v2716, 3
      %v2750 = vsel %vm466, %v2748, %v2749
      %v2751 = vrot.slane %v2717, 3
      %v2752 = vrot.slane %v2718, 3
      %v2753 = vsel %vm466, %v2751, %v2752
      %v2754 = vrot.slane %v2719, 3
      %v2755 = vrot.slane %v2720, 3
      %v2756 = vsel %vm466, %v2754, %v2755
      %v2757 = vrot.slane %v2721, 3
      %v2758 = vrot.slane %v2722, 3
      %v2759 = vsel %vm466, %v2757, %v2758
      %v2760 = vrot.slane %v2723, 3
      %v2761 = vrot.slane %v2724, 3
      %v2762 = vsel %vm466, %v2760, %v2761
      %v2763 = vrot.slane %v2725, 3
      %v2764 = vrot.slane %v2726, 3
      %v2765 = vsel %vm466, %v2763, %v2764
      %v2766 = vrot.slane %v2727, 3
      %v2767 = vrot.slane %v2728, 3
      %v2768 = vsel %vm466, %v2766, %v2767
      %v2777 = vadd.f32 %v2704, %v2747
      %v2778 = vadd.f32 %v2705, %v2750
      %v2779 = vadd.f32 %v2706, %v2753
      %v2780 = vadd.f32 %v2707, %v2756
      %v2781 = vadd.f32 %v2708, %v2759
      %v2782 = vadd.f32 %v2709, %v2762
      %v2783 = vadd.f32 %v2710, %v2765
      %v2784 = vadd.f32 %v2711, %v2768
      %v2785 = vperm.slane %v265, 7
      %v2786 = vmul.f32 %v243, %v2785
      %v2787 = vmul.f32 %v244, %v2785
      %v2788 = vmul.f32 %v245, %v2785
      %v2789 = vmul.f32 %v246, %v2785
      %v2790 = vmul.f32 %v247, %v2785
      %v2791 = vmul.f32 %v248, %v2785
      %v2792 = vmul.f32 %v249, %v2785
      %v2793 = vmul.f32 %v250, %v2785
      %v2794 = vmul.f32 %v251, %v2785
      %v2795 = vmul.f32 %v252, %v2785
      %v2796 = vmul.f32 %v253, %v2785
      %v2797 = vmul.f32 %v254, %v2785
      %v2798 = vmul.f32 %v255, %v2785
      %v2799 = vmul.f32 %v256, %v2785
      %v2800 = vmul.f32 %v257, %v2785
      %v2801 = vmul.f32 %v258, %v2785
      %v2818 = vrot.slane %v2786, 4
      %v2819 = vrot.slane %v2787, 4
      %v2820 = vsel %vm540, %v2818, %v2819
      %v2821 = vrot.slane %v2788, 4
      %v2822 = vrot.slane %v2789, 4
      %v2823 = vsel %vm540, %v2821, %v2822
      %v2824 = vrot.slane %v2790, 4
      %v2825 = vrot.slane %v2791, 4
      %v2826 = vsel %vm540, %v2824, %v2825
      %v2827 = vrot.slane %v2792, 4
      %v2828 = vrot.slane %v2793, 4
      %v2829 = vsel %vm540, %v2827, %v2828
      %v2830 = vrot.slane %v2794, 4
      %v2831 = vrot.slane %v2795, 4
      %v2832 = vsel %vm540, %v2830, %v2831
      %v2833 = vrot.slane %v2796, 4
      %v2834 = vrot.slane %v2797, 4
      %v2835 = vsel %vm540, %v2833, %v2834
      %v2836 = vrot.slane %v2798, 4
      %v2837 = vrot.slane %v2799, 4
      %v2838 = vsel %vm540, %v2836, %v2837
      %v2839 = vrot.slane %v2800, 4
      %v2840 = vrot.slane %v2801, 4
      %v2841 = vsel %vm540, %v2839, %v2840
      %v2850 = vadd.f32 %v2777, %v2820
      %v2851 = vadd.f32 %v2778, %v2823
      %v2852 = vadd.f32 %v2779, %v2826
      %v2853 = vadd.f32 %v2780, %v2829
      %v2854 = vadd.f32 %v2781, %v2832
      %v2855 = vadd.f32 %v2782, %v2835
      %v2856 = vadd.f32 %v2783, %v2838
      %v2857 = vadd.f32 %v2784, %v2841
      %v2858 = vperm.slane %v266, 0
      %v2859 = vmul.f32 %v243, %v2858
      %v2860 = vmul.f32 %v244, %v2858
      %v2861 = vmul.f32 %v245, %v2858
      %v2862 = vmul.f32 %v246, %v2858
      %v2863 = vmul.f32 %v247, %v2858
      %v2864 = vmul.f32 %v248, %v2858
      %v2865 = vmul.f32 %v249, %v2858
      %v2866 = vmul.f32 %v250, %v2858
      %v2867 = vmul.f32 %v251, %v2858
      %v2868 = vmul.f32 %v252, %v2858
      %v2869 = vmul.f32 %v253, %v2858
      %v2870 = vmul.f32 %v254, %v2858
      %v2871 = vmul.f32 %v255, %v2858
      %v2872 = vmul.f32 %v256, %v2858
      %v2873 = vmul.f32 %v257, %v2858
      %v2874 = vmul.f32 %v258, %v2858
      %v2891 = vrot.slane %v2859, 5
      %v2892 = vrot.slane %v2860, 5
      %v2893 = vsel %vm614, %v2891, %v2892
      %v2894 = vrot.slane %v2861, 5
      %v2895 = vrot.slane %v2862, 5
      %v2896 = vsel %vm614, %v2894, %v2895
      %v2897 = vrot.slane %v2863, 5
      %v2898 = vrot.slane %v2864, 5
      %v2899 = vsel %vm614, %v2897, %v2898
      %v2900 = vrot.slane %v2865, 5
      %v2901 = vrot.slane %v2866, 5
      %v2902 = vsel %vm614, %v2900, %v2901
      %v2903 = vrot.slane %v2867, 5
      %v2904 = vrot.slane %v2868, 5
      %v2905 = vsel %vm614, %v2903, %v2904
      %v2906 = vrot.slane %v2869, 5
      %v2907 = vrot.slane %v2870, 5
      %v2908 = vsel %vm614, %v2906, %v2907
      %v2909 = vrot.slane %v2871, 5
      %v2910 = vrot.slane %v2872, 5
      %v2911 = vsel %vm614, %v2909, %v2910
      %v2912 = vrot.slane %v2873, 5
      %v2913 = vrot.slane %v2874, 5
      %v2914 = vsel %vm614, %v2912, %v2913
      %v2923 = vadd.f32 %v2850, %v2893
      %v2924 = vadd.f32 %v2851, %v2896
      %v2925 = vadd.f32 %v2852, %v2899
      %v2926 = vadd.f32 %v2853, %v2902
      %v2927 = vadd.f32 %v2854, %v2905
      %v2928 = vadd.f32 %v2855, %v2908
      %v2929 = vadd.f32 %v2856, %v2911
      %v2930 = vadd.f32 %v2857, %v2914
      %v2931 = vperm.slane %v266, 1
      %v2932 = vmul.f32 %v243, %v2931
      %v2933 = vmul.f32 %v244, %v2931
      %v2934 = vmul.f32 %v245, %v2931
      %v2935 = vmul.f32 %v246, %v2931
      %v2936 = vmul.f32 %v247, %v2931
      %v2937 = vmul.f32 %v248, %v2931
      %v2938 = vmul.f32 %v249, %v2931
      %v2939 = vmul.f32 %v250, %v2931
      %v2940 = vmul.f32 %v251, %v2931
      %v2941 = vmul.f32 %v252, %v2931
      %v2942 = vmul.f32 %v253, %v2931
      %v2943 = vmul.f32 %v254, %v2931
      %v2944 = vmul.f32 %v255, %v2931
      %v2945 = vmul.f32 %v256, %v2931
      %v2946 = vmul.f32 %v257, %v2931
      %v2947 = vmul.f32 %v258, %v2931
      %v2964 = vrot.slane %v2932, 6
      %v2965 = vrot.slane %v2933, 6
      %v2966 = vsel %vm688, %v2964, %v2965
      %v2967 = vrot.slane %v2934, 6
      %v2968 = vrot.slane %v2935, 6
      %v2969 = vsel %vm688, %v2967, %v2968
      %v2970 = vrot.slane %v2936, 6
      %v2971 = vrot.slane %v2937, 6
      %v2972 = vsel %vm688, %v2970, %v2971
      %v2973 = vrot.slane %v2938, 6
      %v2974 = vrot.slane %v2939, 6
      %v2975 = vsel %vm688, %v2973, %v2974
      %v2976 = vrot.slane %v2940, 6
      %v2977 = vrot.slane %v2941, 6
      %v2978 = vsel %vm688, %v2976, %v2977
      %v2979 = vrot.slane %v2942, 6
      %v2980 = vrot.slane %v2943, 6
      %v2981 = vsel %vm688, %v2979, %v2980
      %v2982 = vrot.slane %v2944, 6
      %v2983 = vrot.slane %v2945, 6
      %v2984 = vsel %vm688, %v2982, %v2983
      %v2985 = vrot.slane %v2946, 6
      %v2986 = vrot.slane %v2947, 6
      %v2987 = vsel %vm688, %v2985, %v2986
      %v2996 = vadd.f32 %v2923, %v2966
      %v2997 = vadd.f32 %v2924, %v2969
      %v2998 = vadd.f32 %v2925, %v2972
      %v2999 = vadd.f32 %v2926, %v2975
      %v3000 = vadd.f32 %v2927, %v2978
      %v3001 = vadd.f32 %v2928, %v2981
      %v3002 = vadd.f32 %v2929, %v2984
      %v3003 = vadd.f32 %v2930, %v2987
      %v3004 = vperm.slane %v266, 2
      %v3005 = vmul.f32 %v245, %v3004
      %v3006 = vmul.f32 %v247, %v3004
      %v3007 = vmul.f32 %v249, %v3004
      %v3008 = vmul.f32 %v251, %v3004
      %v3009 = vmul.f32 %v253, %v3004
      %v3010 = vmul.f32 %v255, %v3004
      %v3011 = vmul.f32 %v257, %v3004
      %v3012 = vmul.f32 %v259, %v3004
      %v3013 = vadd.f32 %v2996, %v3005
      %v3014 = vadd.f32 %v2997, %v3006
      %v3015 = vadd.f32 %v2998, %v3007
      %v3016 = vadd.f32 %v2999, %v3008
      %v3017 = vadd.f32 %v3000, %v3009
      %v3018 = vadd.f32 %v3001, %v3010
      %v3019 = vadd.f32 %v3002, %v3011
      %v3020 = vadd.f32 %v3003, %v3012
      %v3021 = vperm.slane %v266, 3
      %v3022 = vmul.f32 %v245, %v3021
      %v3023 = vmul.f32 %v246, %v3021
      %v3024 = vmul.f32 %v247, %v3021
      %v3025 = vmul.f32 %v248, %v3021
      %v3026 = vmul.f32 %v249, %v3021
      %v3027 = vmul.f32 %v250, %v3021
      %v3028 = vmul.f32 %v251, %v3021
      %v3029 = vmul.f32 %v252, %v3021
      %v3030 = vmul.f32 %v253, %v3021
      %v3031 = vmul.f32 %v254, %v3021
      %v3032 = vmul.f32 %v255, %v3021
      %v3033 = vmul.f32 %v256, %v3021
      %v3034 = vmul.f32 %v257, %v3021
      %v3035 = vmul.f32 %v258, %v3021
      %v3036 = vmul.f32 %v259, %v3021
      %v3037 = vmul.f32 %v260, %v3021
      %v3054 = vrot.slane %v3022, 1
      %v3055 = vrot.slane %v3023, 1
      %v3056 = vsel %vm318, %v3054, %v3055
      %v3057 = vrot.slane %v3024, 1
      %v3058 = vrot.slane %v3025, 1
      %v3059 = vsel %vm318, %v3057, %v3058
      %v3060 = vrot.slane %v3026, 1
      %v3061 = vrot.slane %v3027, 1
      %v3062 = vsel %vm318, %v3060, %v3061
      %v3063 = vrot.slane %v3028, 1
      %v3064 = vrot.slane %v3029, 1
      %v3065 = vsel %vm318, %v3063, %v3064
      %v3066 = vrot.slane %v3030, 1
      %v3067 = vrot.slane %v3031, 1
      %v3068 = vsel %vm318, %v3066, %v3067
      %v3069 = vrot.slane %v3032, 1
      %v3070 = vrot.slane %v3033, 1
      %v3071 = vsel %vm318, %v3069, %v3070
      %v3072 = vrot.slane %v3034, 1
      %v3073 = vrot.slane %v3035, 1
      %v3074 = vsel %vm318, %v3072, %v3073
      %v3075 = vrot.slane %v3036, 1
      %v3076 = vrot.slane %v3037, 1
      %v3077 = vsel %vm318, %v3075, %v3076
      %v3086 = vadd.f32 %v3013, %v3056
      %v3087 = vadd.f32 %v3014, %v3059
      %v3088 = vadd.f32 %v3015, %v3062
      %v3089 = vadd.f32 %v3016, %v3065
      %v3090 = vadd.f32 %v3017, %v3068
      %v3091 = vadd.f32 %v3018, %v3071
      %v3092 = vadd.f32 %v3019, %v3074
      %v3093 = vadd.f32 %v3020, %v3077
      %v3094 = vperm.slane %v266, 4
      %v3095 = vmul.f32 %v245, %v3094
      %v3096 = vmul.f32 %v246, %v3094
      %v3097 = vmul.f32 %v247, %v3094
      %v3098 = vmul.f32 %v248, %v3094
      %v3099 = vmul.f32 %v249, %v3094
      %v3100 = vmul.f32 %v250, %v3094
      %v3101 = vmul.f32 %v251, %v3094
      %v3102 = vmul.f32 %v252, %v3094
      %v3103 = vmul.f32 %v253, %v3094
      %v3104 = vmul.f32 %v254, %v3094
      %v3105 = vmul.f32 %v255, %v3094
      %v3106 = vmul.f32 %v256, %v3094
      %v3107 = vmul.f32 %v257, %v3094
      %v3108 = vmul.f32 %v258, %v3094
      %v3109 = vmul.f32 %v259, %v3094
      %v3110 = vmul.f32 %v260, %v3094
      %v3127 = vrot.slane %v3095, 2
      %v3128 = vrot.slane %v3096, 2
      %v3129 = vsel %vm392, %v3127, %v3128
      %v3130 = vrot.slane %v3097, 2
      %v3131 = vrot.slane %v3098, 2
      %v3132 = vsel %vm392, %v3130, %v3131
      %v3133 = vrot.slane %v3099, 2
      %v3134 = vrot.slane %v3100, 2
      %v3135 = vsel %vm392, %v3133, %v3134
      %v3136 = vrot.slane %v3101, 2
      %v3137 = vrot.slane %v3102, 2
      %v3138 = vsel %vm392, %v3136, %v3137
      %v3139 = vrot.slane %v3103, 2
      %v3140 = vrot.slane %v3104, 2
      %v3141 = vsel %vm392, %v3139, %v3140
      %v3142 = vrot.slane %v3105, 2
      %v3143 = vrot.slane %v3106, 2
      %v3144 = vsel %vm392, %v3142, %v3143
      %v3145 = vrot.slane %v3107, 2
      %v3146 = vrot.slane %v3108, 2
      %v3147 = vsel %vm392, %v3145, %v3146
      %v3148 = vrot.slane %v3109, 2
      %v3149 = vrot.slane %v3110, 2
      %v3150 = vsel %vm392, %v3148, %v3149
      %v3159 = vadd.f32 %v3086, %v3129
      %v3160 = vadd.f32 %v3087, %v3132
      %v3161 = vadd.f32 %v3088, %v3135
      %v3162 = vadd.f32 %v3089, %v3138
      %v3163 = vadd.f32 %v3090, %v3141
      %v3164 = vadd.f32 %v3091, %v3144
      %v3165 = vadd.f32 %v3092, %v3147
      %v3166 = vadd.f32 %v3093, %v3150
      %v3167 = vperm.slane %v266, 5
      %v3168 = vmul.f32 %v245, %v3167
      %v3169 = vmul.f32 %v246, %v3167
      %v3170 = vmul.f32 %v247, %v3167
      %v3171 = vmul.f32 %v248, %v3167
      %v3172 = vmul.f32 %v249, %v3167
      %v3173 = vmul.f32 %v250, %v3167
      %v3174 = vmul.f32 %v251, %v3167
      %v3175 = vmul.f32 %v252, %v3167
      %v3176 = vmul.f32 %v253, %v3167
      %v3177 = vmul.f32 %v254, %v3167
      %v3178 = vmul.f32 %v255, %v3167
      %v3179 = vmul.f32 %v256, %v3167
      %v3180 = vmul.f32 %v257, %v3167
      %v3181 = vmul.f32 %v258, %v3167
      %v3182 = vmul.f32 %v259, %v3167
      %v3183 = vmul.f32 %v260, %v3167
      %v3200 = vrot.slane %v3168, 3
      %v3201 = vrot.slane %v3169, 3
      %v3202 = vsel %vm466, %v3200, %v3201
      %v3203 = vrot.slane %v3170, 3
      %v3204 = vrot.slane %v3171, 3
      %v3205 = vsel %vm466, %v3203, %v3204
      %v3206 = vrot.slane %v3172, 3
      %v3207 = vrot.slane %v3173, 3
      %v3208 = vsel %vm466, %v3206, %v3207
      %v3209 = vrot.slane %v3174, 3
      %v3210 = vrot.slane %v3175, 3
      %v3211 = vsel %vm466, %v3209, %v3210
      %v3212 = vrot.slane %v3176, 3
      %v3213 = vrot.slane %v3177, 3
      %v3214 = vsel %vm466, %v3212, %v3213
      %v3215 = vrot.slane %v3178, 3
      %v3216 = vrot.slane %v3179, 3
      %v3217 = vsel %vm466, %v3215, %v3216
      %v3218 = vrot.slane %v3180, 3
      %v3219 = vrot.slane %v3181, 3
      %v3220 = vsel %vm466, %v3218, %v3219
      %v3221 = vrot.slane %v3182, 3
      %v3222 = vrot.slane %v3183, 3
      %v3223 = vsel %vm466, %v3221, %v3222
      %v3232 = vadd.f32 %v3159, %v3202
      %v3233 = vadd.f32 %v3160, %v3205
      %v3234 = vadd.f32 %v3161, %v3208
      %v3235 = vadd.f32 %v3162, %v3211
      %v3236 = vadd.f32 %v3163, %v3214
      %v3237 = vadd.f32 %v3164, %v3217
      %v3238 = vadd.f32 %v3165, %v3220
      %v3239 = vadd.f32 %v3166, %v3223
      %v3240 = vperm.slane %v266, 6
      %v3241 = vmul.f32 %v245, %v3240
      %v3242 = vmul.f32 %v246, %v3240
      %v3243 = vmul.f32 %v247, %v3240
      %v3244 = vmul.f32 %v248, %v3240
      %v3245 = vmul.f32 %v249, %v3240
      %v3246 = vmul.f32 %v250, %v3240
      %v3247 = vmul.f32 %v251, %v3240
      %v3248 = vmul.f32 %v252, %v3240
      %v3249 = vmul.f32 %v253, %v3240
      %v3250 = vmul.f32 %v254, %v3240
      %v3251 = vmul.f32 %v255, %v3240
      %v3252 = vmul.f32 %v256, %v3240
      %v3253 = vmul.f32 %v257, %v3240
      %v3254 = vmul.f32 %v258, %v3240
      %v3255 = vmul.f32 %v259, %v3240
      %v3256 = vmul.f32 %v260, %v3240
      %v3273 = vrot.slane %v3241, 4
      %v3274 = vrot.slane %v3242, 4
      %v3275 = vsel %vm540, %v3273, %v3274
      %v3276 = vrot.slane %v3243, 4
      %v3277 = vrot.slane %v3244, 4
      %v3278 = vsel %vm540, %v3276, %v3277
      %v3279 = vrot.slane %v3245, 4
      %v3280 = vrot.slane %v3246, 4
      %v3281 = vsel %vm540, %v3279, %v3280
      %v3282 = vrot.slane %v3247, 4
      %v3283 = vrot.slane %v3248, 4
      %v3284 = vsel %vm540, %v3282, %v3283
      %v3285 = vrot.slane %v3249, 4
      %v3286 = vrot.slane %v3250, 4
      %v3287 = vsel %vm540, %v3285, %v3286
      %v3288 = vrot.slane %v3251, 4
      %v3289 = vrot.slane %v3252, 4
      %v3290 = vsel %vm540, %v3288, %v3289
      %v3291 = vrot.slane %v3253, 4
      %v3292 = vrot.slane %v3254, 4
      %v3293 = vsel %vm540, %v3291, %v3292
      %v3294 = vrot.slane %v3255, 4
      %v3295 = vrot.slane %v3256, 4
      %v3296 = vsel %vm540, %v3294, %v3295
      %v3305 = vadd.f32 %v3232, %v3275
      %v3306 = vadd.f32 %v3233, %v3278
      %v3307 = vadd.f32 %v3234, %v3281
      %v3308 = vadd.f32 %v3235, %v3284
      %v3309 = vadd.f32 %v3236, %v3287
      %v3310 = vadd.f32 %v3237, %v3290
      %v3311 = vadd.f32 %v3238, %v3293
      %v3312 = vadd.f32 %v3239, %v3296
      %v3313 = vperm.slane %v266, 7
      %v3314 = vmul.f32 %v245, %v3313
      %v3315 = vmul.f32 %v246, %v3313
      %v3316 = vmul.f32 %v247, %v3313
      %v3317 = vmul.f32 %v248, %v3313
      %v3318 = vmul.f32 %v249, %v3313
      %v3319 = vmul.f32 %v250, %v3313
      %v3320 = vmul.f32 %v251, %v3313
      %v3321 = vmul.f32 %v252, %v3313
      %v3322 = vmul.f32 %v253, %v3313
      %v3323 = vmul.f32 %v254, %v3313
      %v3324 = vmul.f32 %v255, %v3313
      %v3325 = vmul.f32 %v256, %v3313
      %v3326 = vmul.f32 %v257, %v3313
      %v3327 = vmul.f32 %v258, %v3313
      %v3328 = vmul.f32 %v259, %v3313
      %v3329 = vmul.f32 %v260, %v3313
      %v3346 = vrot.slane %v3314, 5
      %v3347 = vrot.slane %v3315, 5
      %v3348 = vsel %vm614, %v3346, %v3347
      %v3349 = vrot.slane %v3316, 5
      %v3350 = vrot.slane %v3317, 5
      %v3351 = vsel %vm614, %v3349, %v3350
      %v3352 = vrot.slane %v3318, 5
      %v3353 = vrot.slane %v3319, 5
      %v3354 = vsel %vm614, %v3352, %v3353
      %v3355 = vrot.slane %v3320, 5
      %v3356 = vrot.slane %v3321, 5
      %v3357 = vsel %vm614, %v3355, %v3356
      %v3358 = vrot.slane %v3322, 5
      %v3359 = vrot.slane %v3323, 5
      %v3360 = vsel %vm614, %v3358, %v3359
      %v3361 = vrot.slane %v3324, 5
      %v3362 = vrot.slane %v3325, 5
      %v3363 = vsel %vm614, %v3361, %v3362
      %v3364 = vrot.slane %v3326, 5
      %v3365 = vrot.slane %v3327, 5
      %v3366 = vsel %vm614, %v3364, %v3365
      %v3367 = vrot.slane %v3328, 5
      %v3368 = vrot.slane %v3329, 5
      %v3369 = vsel %vm614, %v3367, %v3368
      %v3378 = vadd.f32 %v3305, %v3348
      %v3379 = vadd.f32 %v3306, %v3351
      %v3380 = vadd.f32 %v3307, %v3354
      %v3381 = vadd.f32 %v3308, %v3357
      %v3382 = vadd.f32 %v3309, %v3360
      %v3383 = vadd.f32 %v3310, %v3363
      %v3384 = vadd.f32 %v3311, %v3366
      %v3385 = vadd.f32 %v3312, %v3369
      %v3386 = vperm.slane %v267, 0
      %v3387 = vmul.f32 %v245, %v3386
      %v3388 = vmul.f32 %v246, %v3386
      %v3389 = vmul.f32 %v247, %v3386
      %v3390 = vmul.f32 %v248, %v3386
      %v3391 = vmul.f32 %v249, %v3386
      %v3392 = vmul.f32 %v250, %v3386
      %v3393 = vmul.f32 %v251, %v3386
      %v3394 = vmul.f32 %v252, %v3386
      %v3395 = vmul.f32 %v253, %v3386
      %v3396 = vmul.f32 %v254, %v3386
      %v3397 = vmul.f32 %v255, %v3386
      %v3398 = vmul.f32 %v256, %v3386
      %v3399 = vmul.f32 %v257, %v3386
      %v3400 = vmul.f32 %v258, %v3386
      %v3401 = vmul.f32 %v259, %v3386
      %v3402 = vmul.f32 %v260, %v3386
      %v3419 = vrot.slane %v3387, 6
      %v3420 = vrot.slane %v3388, 6
      %v3421 = vsel %vm688, %v3419, %v3420
      %v3422 = vrot.slane %v3389, 6
      %v3423 = vrot.slane %v3390, 6
      %v3424 = vsel %vm688, %v3422, %v3423
      %v3425 = vrot.slane %v3391, 6
      %v3426 = vrot.slane %v3392, 6
      %v3427 = vsel %vm688, %v3425, %v3426
      %v3428 = vrot.slane %v3393, 6
      %v3429 = vrot.slane %v3394, 6
      %v3430 = vsel %vm688, %v3428, %v3429
      %v3431 = vrot.slane %v3395, 6
      %v3432 = vrot.slane %v3396, 6
      %v3433 = vsel %vm688, %v3431, %v3432
      %v3434 = vrot.slane %v3397, 6
      %v3435 = vrot.slane %v3398, 6
      %v3436 = vsel %vm688, %v3434, %v3435
      %v3437 = vrot.slane %v3399, 6
      %v3438 = vrot.slane %v3400, 6
      %v3439 = vsel %vm688, %v3437, %v3438
      %v3440 = vrot.slane %v3401, 6
      %v3441 = vrot.slane %v3402, 6
      %v3442 = vsel %vm688, %v3440, %v3441
      %v3451 = vadd.f32 %v3378, %v3421
      %v3452 = vadd.f32 %v3379, %v3424
      %v3453 = vadd.f32 %v3380, %v3427
      %v3454 = vadd.f32 %v3381, %v3430
      %v3455 = vadd.f32 %v3382, %v3433
      %v3456 = vadd.f32 %v3383, %v3436
      %v3457 = vadd.f32 %v3384, %v3439
      %v3458 = vadd.f32 %v3385, %v3442
      %v3459 = vld [vmem:[%s224] sm:$0x1]
      %v3461 = vperm.slane %v3459, 0
      %v3463 = vadd.f32 %v3451, %v3461
      %v3464 = vadd.f32 %v3452, %v3461
      %v3465 = vadd.f32 %v3453, %v3461
      %v3466 = vadd.f32 %v3454, %v3461
      %v3467 = vadd.f32 %v3455, %v3461
      %v3468 = vadd.f32 %v3456, %v3461
      %v3469 = vadd.f32 %v3457, %v3461
      %v3470 = vadd.f32 %v3458, %v3461
      %3471 = vst [vmem:[%s232] sm:$0xff] %v3463
      %3472 = vst [vmem:[%s232 + $0x8] sm:$0xff] %v3464
      %3473 = vst [vmem:[%s232 + $0x10] sm:$0xff] %v3465
      %3474 = vst [vmem:[%s232 + $0x18] sm:$0xff] %v3466
      %3475 = vst [vmem:[%s232 + $0x20] sm:$0xff] %v3467
      %3476 = vst [vmem:[%s232 + $0x28] sm:$0xff] %v3468
      %3477 = vst [vmem:[%s232 + $0x30] sm:$0xff] %v3469
      %3478 = vst [vmem:[%s232 + $0x38] sm:$0xff] %v3470
      %p3479 = scmp.lt.s32.totalorder %s18, 1
      %s3480 = scalar_select %p3479, %s18, 1
      %p3481 = scmp.lt.s32.totalorder %s19, 0
      %s3482 = scalar_select %p3481, %s19, 0
      %s3483 = smul.addr %s3480, 8
      %s3484 = sadd.s32 %s3482, %s3483
      %s3485 = smul.addr %s3484, 8
      %s3486 = scalar_lea.vmem %s3, %s3485
      // Predicated region
      $region33: #{ppeg_forward.1} parent=31 // pred_check
        %p3487 = pneg %p126
      $region34: #{ppeg_forward.1} parent=31 // pred_check_branch
        %3489 = sbr.rel (%p3487) target = $region36
      $region35: #{ppeg_forward.1} parent=31 // pred_region
        _
      $region36: #{ppeg_forward.1} parent=31 // pred_fallthru
        _
    $region32: #{ppeg_forward.1} parent=5 // pred_fallthru
      _
    %p3490 = scmp.le.s32.totalorder 2, %s9
    // Predicated region
    $region37: #{ppeg_forward.1} parent=5 // pred_check
      %p3491 = pneg %p3490
    $region38: #{ppeg_forward.1} parent=5 // pred_check_branch
      %3493 = sbr.rel (%p3491) target = $region40
    $region39: #{ppeg_forward.1} parent=5 // pred_region
      %s3494 = ssub.s32 %s9, 2
      // Predicated region
      $region41: #{ppeg_forward.1} parent=39 // pred_check
        %p3495 = pneg %p132
      $region42: #{ppeg_forward.1} parent=39 // pred_check_branch
        %3497 = sbr.rel (%p3495) target = $region44
      $region43: #{ppeg_forward.1} parent=39 // pred_region
        %p3498 = scmp.lt.s32.totalorder %s20, 1
        %s3499 = scalar_select %p3498, %s20, 1
        %p3500 = scmp.lt.s32.totalorder %s21, 0
        %s3501 = scalar_select %p3500, %s21, 0
        %s3502 = smul.addr %s3499, 8
        %s3503 = sadd.s32 %s3501, %s3502
        %s3504 = smul.addr %s3503, 8
        %s3505 = scalar_lea.vmem %s3, %s3504
      $region44: #{ppeg_forward.1} parent=39 // pred_fallthru
        _
    $region40: #{ppeg_forward.1} parent=5 // pred_fallthru
      _
  $region6: #{ppeg_forward.1} parent=0 // loop_footer
    %s13 = sadd.s32 1, %s9
  $region7: #{ppeg_forward.1} parent=0 // loop_footer_branch
    %8 = sbr.rel target = $region3
  $region8: #{ppeg_forward.1} parent=0 // loop_exit
    _

</llo_original>
